<compile_context>
chip_gen: v7x
topology: tpu7x:2x2x1
jax: 0.10.0
libtpu: 0.0.40
codegen_flags: <defaults>
</compile_context>

<pallas_src>
import numpy as np
import jax
import jax.numpy as jnp
from jax.experimental import pallas as pl
from jax.experimental.pallas import tpu as pltpu

LANE = 128


# ----------------------- fused Pallas kernel --------------------------------

def _make_fused_kernel(num_layers):
    """Fused HistgramStd forward for a fixed number of FC+BN+ReLU layers."""

    def kernel(*args):
        # args = (x_ref, w0, b0, ..., w_{L-1}, b_{L-1}, head_w, head_b,
        #         out_ref, sum_sc, sq_sc, cnt_sc)
        x_ref = args[0]
        layer_refs = args[1:1 + 2 * num_layers]
        head_w_ref = args[1 + 2 * num_layers]
        head_b_ref = args[2 + 2 * num_layers]
        out_ref = args[3 + 2 * num_layers]
        sum_sc, sq_sc, cnt_sc = args[4 + 2 * num_layers:]

        k = pl.program_id(1)

        @pl.when(k == 0)
        def _():
            sum_sc[...] = jnp.zeros_like(sum_sc)
            sq_sc[...] = jnp.zeros_like(sq_sc)
            cnt_sc[...] = jnp.zeros_like(cnt_sc)

        f = x_ref[...].astype(jnp.float32)                     # (TB, TN, D)
        row_sum = jnp.sum(f, axis=2)                           # (TB, TN)
        mask = (row_sum != 0.0).astype(jnp.float32)            # valid-row mask
        mask3 = mask[:, None, :]                               # (TB, 1, TN)

        # N-contraction on the MXU (masked sum and sum of squares over rows).
        sum_sc[...] += jnp.einsum('bqn,bnd->bqd', mask3, f,
                                  preferred_element_type=jnp.float32)[:, 0, :]
        sq_sc[...] += jnp.einsum('bqn,bnd->bqd', mask3, f * f,
                                 preferred_element_type=jnp.float32)[:, 0, :]
        cnt_sc[...] += jnp.sum(mask, axis=1, keepdims=True)    # (TB, 1)

        @pl.when(k == pl.num_programs(1) - 1)
        def _():
            # count==0 would be NaN in the numpy reference; clamp to 1.
            cnt = jnp.maximum(cnt_sc[...], 1.0)                # (TB, 1)
            mean = sum_sc[...] / cnt                           # (TB, D)
            var = sq_sc[...] / cnt - mean * mean
            h = jnp.sqrt(jnp.maximum(var, 0.0))                # std feature

            # HistgramStdBasicBlocks: Linear(+folded BN) -> ReLU.
            for l in range(num_layers):
                w = layer_refs[2 * l][...]
                b = layer_refs[2 * l + 1][...]
                h = jnp.maximum(
                    jnp.dot(h, w, preferred_element_type=jnp.float32) + b, 0.0)

            # Lane-dense output slab: [ hidden | logits | zero pad ] via a
            # single MXU matmul against the host-prepared padded head.
            out_ref[...] = (jnp.dot(h, head_w_ref[...],
                                    preferred_element_type=jnp.float32)
                            + head_b_ref[...])

    return kernel


# ----------------------- wrapper --------------------------------------------

def _choose_tile(total, target):
    """Largest t <= target with total % t == 0 and (t % 8 == 0 or t == total)."""
    if total <= target:
        return total
    for t in range(target, 7, -1):
        if total % t == 0 and t % 8 == 0:
            return t
    return total


def histgram_std_forward(feature, kparams, *, tb=None, tn=None):
    """HistgramStd.forward(data, return_loss=False, return_data=False)."""
    bs, N, D = feature.shape
    layers = kparams["layers"]
    num_layers = len(layers)
    hidden_dim = kparams["hidden_dim"]
    num_classes = kparams["num_classes"]
    out_pad = kparams["out_pad"]
    head_w, head_b = kparams["head_w"], kparams["head_b"]

    if tb is None:
        tb = _choose_tile(bs, 128)
    if tn is None:
        tn = _choose_tile(N, 256)
    assert bs % tb == 0 and (tb % 8 == 0 or tb == bs)
    assert N % tn == 0 and (tn % 8 == 0 or tn == N)

    grid = (bs // tb, N // tn)

    in_specs = [pl.BlockSpec((tb, tn, D), lambda b, k: (b, k, 0))]
    inputs = [feature]
    for (w, b) in layers:
        din, dout = w.shape
        in_specs.append(pl.BlockSpec((din, dout), lambda b, k: (0, 0)))
        in_specs.append(pl.BlockSpec((1, dout), lambda b, k: (0, 0)))
        inputs += [w, b]
    in_specs.append(pl.BlockSpec(head_w.shape, lambda b, k: (0, 0)))
    in_specs.append(pl.BlockSpec(head_b.shape, lambda b, k: (0, 0)))
    inputs += [head_w, head_b]

    slab = pl.pallas_call(
        _make_fused_kernel(num_layers),
        out_shape=jax.ShapeDtypeStruct((bs, out_pad), jnp.float32),
        grid_spec=pltpu.PrefetchScalarGridSpec(
            num_scalar_prefetch=0,
            grid=grid,
            in_specs=in_specs,
            out_specs=pl.BlockSpec((tb, out_pad), lambda b, k: (b, 0)),
            scratch_shapes=[pltpu.VMEM((tb, D), jnp.float32),   # masked sum
                            pltpu.VMEM((tb, D), jnp.float32),   # masked sum sq
                            pltpu.VMEM((tb, 1), jnp.float32)],  # valid count
        ),
        compiler_params=pltpu.CompilerParams(
            dimension_semantics=("parallel", "arbitrary")),
    )(*inputs)

    hidden = slab[:, :hidden_dim]
    logits = slab[:, hidden_dim:hidden_dim + num_classes]
    return logits, hidden


# ----------------------- parameter setup (host side, one time) --------------

def init_params(key, feature_dim, planes, num_classes=2):
    """Raw params mirroring nn.Linear default init + fresh BatchNorm1d stats."""
    eps = 1e-5
    raw = {"layers": [], "bn_eps": eps}
    inplanes = feature_dim                       # num_hist_bins = 0
    for plane in planes:
        key, kw, kb = jax.random.split(key, 3)
        bound = 1.0 / np.sqrt(inplanes)
        w = jax.random.uniform(kw, (inplanes, plane), jnp.float32, -bound, bound)
        b = jax.random.uniform(kb, (1, plane), jnp.float32, -bound, bound)
        gamma = jnp.ones((1, plane), jnp.float32)
        beta = jnp.zeros((1, plane), jnp.float32)
        run_mean = jnp.zeros((1, plane), jnp.float32)
        run_var = jnp.ones((1, plane), jnp.float32)
        raw["layers"].append((w, b, gamma, beta, run_mean, run_var))
        inplanes = plane
    key, kw, kb = jax.random.split(key, 3)
    bound = 1.0 / np.sqrt(inplanes)
    raw["cls_w"] = jax.random.uniform(kw, (inplanes, num_classes),
                                      jnp.float32, -bound, bound)
    raw["cls_b"] = jax.random.uniform(kb, (1, num_classes),
                                      jnp.float32, -bound, bound)
    return raw


def fold_params(raw):
    """Fold frozen BN into the Linear weights and build the lane-dense head."""
    eps = raw["bn_eps"]
    layers = []
    for (w, b, gamma, beta, mu, var) in raw["layers"]:
        scale = gamma / jnp.sqrt(var + eps)              # (1, plane)
        shift = beta - mu * scale
        layers.append((w * scale, b * scale + shift))
    hidden_dim, num_classes = raw["cls_w"].shape
    out_pad = ((hidden_dim + num_classes + LANE - 1) // LANE) * LANE
    head_w = jnp.zeros((hidden_dim, out_pad), jnp.float32)
    head_w = head_w.at[:, :hidden_dim].set(jnp.eye(hidden_dim, dtype=jnp.float32))
    head_w = head_w.at[:, hidden_dim:hidden_dim + num_classes].set(raw["cls_w"])
    head_b = jnp.zeros((1, out_pad), jnp.float32)
    head_b = head_b.at[:, hidden_dim:hidden_dim + num_classes].set(raw["cls_b"])
    return {"layers": layers, "head_w": head_w, "head_b": head_b,
            "hidden_dim": hidden_dim, "num_classes": num_classes,
            "out_pad": out_pad}


# ----------------------- demo ------------------------------------------------

if __name__ == "__main__":
    key = jax.random.PRNGKey(0)
    bs, N, D = 16, 32, 32          # (batch, nodes per proposal, feature_dim)
    planes = (64, 32)
    k_x, k_p = jax.random.split(key)

    feature = jax.random.normal(k_x, (bs, N, D), jnp.float32)
    # zero a few rows so the "valid row (sum != 0)" masking path is exercised
    row_mask = np.ones((bs, N, 1), np.float32)
    row_mask[0, 3] = 0.0
    row_mask[1, 0] = 0.0
    row_mask[1, 7] = 0.0
    row_mask[5, 20] = 0.0
    feature = feature * jnp.asarray(row_mask)

    raw_params = init_params(k_p, D, planes, num_classes=2)
    kparams = fold_params(raw_params)

    # tb=8, tn=8 exercises both the batch ("parallel") and N ("arbitrary") tiles
    logits, hidden = histgram_std_forward(feature, kparams, tb=8, tn=8)
    jax.block_until_ready((logits, hidden))

    # silent reference check using the RAW (un-folded) module math
    f_np = np.asarray(feature)
    std_ref = np.zeros((bs, D), np.float32)
    for i in range(bs):
        p = f_np[i]
        valid = p[p.sum(1) != 0]
        m = valid.mean(0)
        c = valid - m
        std_ref[i] = np.sqrt((c * c).mean(0))
    h_ref = std_ref.astype(np.float32)
    eps = raw_params["bn_eps"]
    for (w, b, gamma, beta, mu, var) in raw_params["layers"]:
        y = h_ref @ np.asarray(w) + np.asarray(b)
        y = (y - np.asarray(mu)) / np.sqrt(np.asarray(var) + eps)
        y = y * np.asarray(gamma) + np.asarray(beta)
        h_ref = np.maximum(y, 0.0)
    logits_ref = h_ref @ np.asarray(raw_params["cls_w"]) + np.asarray(raw_params["cls_b"])
    np.testing.assert_allclose(np.asarray(hidden), h_ref, rtol=1e-4, atol=1e-4)
    np.testing.assert_allclose(np.asarray(logits), logits_ref, rtol=1e-4, atol=1e-4)

    print("KERNEL_OK")
</pallas_src>

<mosaic_0001>
module attributes {stable_mosaic.version = 11 : i64} {
  func.func @kernel(%arg0: i32, %arg1: i32, %arg2: memref<8x8x32xf32, #tpu.memory_space<vmem>>, %arg3: memref<32x64xf32, #tpu.memory_space<vmem>>, %arg4: memref<1x64xf32, #tpu.memory_space<vmem>>, %arg5: memref<64x32xf32, #tpu.memory_space<vmem>>, %arg6: memref<1x32xf32, #tpu.memory_space<vmem>>, %arg7: memref<32x128xf32, #tpu.memory_space<vmem>>, %arg8: memref<1x128xf32, #tpu.memory_space<vmem>>, %arg9: memref<8x128xf32, #tpu.memory_space<vmem>>, %arg10: memref<8x32xf32, #tpu.memory_space<vmem>>, %arg11: memref<8x32xf32, #tpu.memory_space<vmem>>, %arg12: memref<8x1xf32, #tpu.memory_space<vmem>>) attributes {dimension_semantics = [#tpu.dimension_semantics<parallel>, #tpu.dimension_semantics<arbitrary>], iteration_bounds = array<i64: 2, 4>, scalar_prefetch = 0 : i64, scratch_operands = 3 : i64, tpu.core_type = #tpu.core_type<tc>, window_params = [{transform_indices = @transform_0, window_bounds = array<i64: 8, 8, 32>}, {pipeline_mode = #tpu.pipeline_mode<synchronous>, transform_indices = @transform_1, window_bounds = array<i64: 32, 64>}, {pipeline_mode = #tpu.pipeline_mode<synchronous>, transform_indices = @transform_2, window_bounds = array<i64: 1, 64>}, {pipeline_mode = #tpu.pipeline_mode<synchronous>, transform_indices = @transform_3, window_bounds = array<i64: 64, 32>}, {pipeline_mode = #tpu.pipeline_mode<synchronous>, transform_indices = @transform_4, window_bounds = array<i64: 1, 32>}, {pipeline_mode = #tpu.pipeline_mode<synchronous>, transform_indices = @transform_5, window_bounds = array<i64: 32, 128>}, {pipeline_mode = #tpu.pipeline_mode<synchronous>, transform_indices = @transform_6, window_bounds = array<i64: 1, 128>}, {transform_indices = @transform_7, window_bounds = array<i64: 8, 128>}]} {
    %c0_i32 = arith.constant 0 : i32
    %0 = arith.cmpi eq, %arg1, %c0_i32 : i32
    %1 = arith.extui %0 : i1 to i32
    %c0_i32_0 = arith.constant 0 : i32
    %2 = arith.cmpi ne, %1, %c0_i32_0 : i32
    scf.if %2 {
      %cst_20 = arith.constant 0.000000e+00 : f32
      %29 = vector.broadcast %cst_20 : f32 to vector<8x32xf32>
      %c0_21 = arith.constant 0 : index
      %c0_22 = arith.constant 0 : index
      %30 = vector.load %arg10[%c0_21, %c0_22] : memref<8x32xf32, #tpu.memory_space<vmem>>, vector<8x32xf32>
      tpu.vector_store %arg10[%c0_21, %c0_22], %29 {strides = array<i32>} : memref<8x32xf32, #tpu.memory_space<vmem>>, vector<8x32xf32>,
      %cst_23 = arith.constant 0.000000e+00 : f32
      %31 = vector.broadcast %cst_23 : f32 to vector<8x32xf32>
      %c0_24 = arith.constant 0 : index
      %c0_25 = arith.constant 0 : index
      %32 = vector.load %arg11[%c0_24, %c0_25] : memref<8x32xf32, #tpu.memory_space<vmem>>, vector<8x32xf32>
      tpu.vector_store %arg11[%c0_24, %c0_25], %31 {strides = array<i32>} : memref<8x32xf32, #tpu.memory_space<vmem>>, vector<8x32xf32>,
      %cst_26 = arith.constant 0.000000e+00 : f32
      %33 = vector.broadcast %cst_26 : f32 to vector<8x1xf32>
      %c0_27 = arith.constant 0 : index
      %c0_28 = arith.constant 0 : index
      %34 = vector.load %arg12[%c0_27, %c0_28] : memref<8x1xf32, #tpu.memory_space<vmem>>, vector<8x1xf32>
      tpu.vector_store %arg12[%c0_27, %c0_28], %33 {strides = array<i32>} : memref<8x1xf32, #tpu.memory_space<vmem>>, vector<8x1xf32>,
    } else {
    }
    %c0 = arith.constant 0 : index
    %c0_1 = arith.constant 0 : index
    %c0_2 = arith.constant 0 : index
    %3 = vector.load %arg2[%c0, %c0_1, %c0_2] : memref<8x8x32xf32, #tpu.memory_space<vmem>>, vector<8x8x32xf32>
    %cst = arith.constant dense<0.000000e+00> : vector<8x8xf32>
    %4 = vector.multi_reduction <add>, %3, %cst [2] : vector<8x8x32xf32> to vector<8x8xf32>
    %cst_3 = arith.constant 0.000000e+00 : f32
    %5 = vector.broadcast %cst_3 : f32 to vector<8x8xf32>
    %6 = arith.cmpf one, %4, %5 : vector<8x8xf32>
    %7 = arith.extui %6 : vector<8x8xi1> to vector<8x8xi32>
    %8 = arith.sitofp %7 : vector<8x8xi32> to vector<8x8xf32>
    %9 = vector.shape_cast %8 : vector<8x8xf32> to vector<8x1x8xf32>
    %c0_4 = arith.constant 0 : index
    %c0_5 = arith.constant 0 : index
    %10 = vector.load %arg10[%c0_4, %c0_5] : memref<8x32xf32, #tpu.memory_space<vmem>>, vector<8x32xf32>
    "tpu.trace_start"() <{level = 10 : i32, message = "bqn,bnd->bqd"}> : () -> ()
    %cst_6 = arith.constant dense<0.000000e+00> : vector<8x1x32xf32>
    %11 = tpu.matmul %9, %3, %cst_6 {dimension_numbers = #tpu.dot_dimension_numbers<[2], [1], [1], [2], [0, 0, 0, 1, 1, 2], [0], [0]>} : vector<8x1x8xf32>, vector<8x8x32xf32>, vector<8x1x32xf32> -> vector<8x1x32xf32>
    "tpu.trace_stop"() : () -> ()
    %12 = vector.shape_cast %11 : vector<8x1x32xf32> to vector<8x32xf32>
    %13 = arith.addf %10, %12 : vector<8x32xf32>
    %c0_7 = arith.constant 0 : index
    %c0_8 = arith.constant 0 : index
    %14 = vector.load %arg10[%c0_7, %c0_8] : memref<8x32xf32, #tpu.memory_space<vmem>>, vector<8x32xf32>
    tpu.vector_store %arg10[%c0_7, %c0_8], %13 {strides = array<i32>} : memref<8x32xf32, #tpu.memory_space<vmem>>, vector<8x32xf32>,
    %c0_9 = arith.constant 0 : index
    %c0_10 = arith.constant 0 : index
    %15 = vector.load %arg11[%c0_9, %c0_10] : memref<8x32xf32, #tpu.memory_space<vmem>>, vector<8x32xf32>
    %16 = arith.mulf %3, %3 : vector<8x8x32xf32>
    "tpu.trace_start"() <{level = 10 : i32, message = "bqn,bnd->bqd"}> : () -> ()
    %cst_11 = arith.constant dense<0.000000e+00> : vector<8x1x32xf32>
    %17 = tpu.matmul %9, %16, %cst_11 {dimension_numbers = #tpu.dot_dimension_numbers<[2], [1], [1], [2], [0, 0, 0, 1, 1, 2], [0], [0]>} : vector<8x1x8xf32>, vector<8x8x32xf32>, vector<8x1x32xf32> -> vector<8x1x32xf32>
    "tpu.trace_stop"() : () -> ()
    %18 = vector.shape_cast %17 : vector<8x1x32xf32> to vector<8x32xf32>
    %19 = arith.addf %15, %18 : vector<8x32xf32>
    %c0_12 = arith.constant 0 : index
    %c0_13 = arith.constant 0 : index
    %20 = vector.load %arg11[%c0_12, %c0_13] : memref<8x32xf32, #tpu.memory_space<vmem>>, vector<8x32xf32>
    tpu.vector_store %arg11[%c0_12, %c0_13], %19 {strides = array<i32>} : memref<8x32xf32, #tpu.memory_space<vmem>>, vector<8x32xf32>,
    %c0_14 = arith.constant 0 : index
    %c0_15 = arith.constant 0 : index
    %21 = vector.load %arg12[%c0_14, %c0_15] : memref<8x1xf32, #tpu.memory_space<vmem>>, vector<8x1xf32>
    %cst_16 = arith.constant dense<0.000000e+00> : vector<8xf32>
    %22 = vector.multi_reduction <add>, %8, %cst_16 [1] : vector<8x8xf32> to vector<8xf32>
    %23 = vector.shape_cast %22 : vector<8xf32> to vector<8x1xf32>
    %24 = arith.addf %21, %23 : vector<8x1xf32>
    %c0_17 = arith.constant 0 : index
    %c0_18 = arith.constant 0 : index
    %25 = vector.load %arg12[%c0_17, %c0_18] : memref<8x1xf32, #tpu.memory_space<vmem>>, vector<8x1xf32>
    tpu.vector_store %arg12[%c0_17, %c0_18], %24 {strides = array<i32>} : memref<8x1xf32, #tpu.memory_space<vmem>>, vector<8x1xf32>,
    %c3_i32 = arith.constant 3 : i32
    %26 = arith.cmpi eq, %arg1, %c3_i32 : i32
    %27 = arith.extui %26 : i1 to i32
    %c0_i32_19 = arith.constant 0 : i32
    %28 = arith.cmpi ne, %27, %c0_i32_19 : i32
    scf.if %28 {
      %c0_20 = arith.constant 0 : index
      %c0_21 = arith.constant 0 : index
      %29 = vector.load %arg12[%c0_20, %c0_21] : memref<8x1xf32, #tpu.memory_space<vmem>>, vector<8x1xf32>
      %cst_22 = arith.constant 1.000000e+00 : f32
      %30 = vector.broadcast %cst_22 : f32 to vector<8x1xf32>
      %31 = arith.maximumf %29, %30 : vector<8x1xf32>
      %c0_23 = arith.constant 0 : index
      %c0_24 = arith.constant 0 : index
      %32 = vector.load %arg10[%c0_23, %c0_24] : memref<8x32xf32, #tpu.memory_space<vmem>>, vector<8x32xf32>
      %33 = vector.broadcast %31 : vector<8x1xf32> to vector<8x32xf32>
      %34 = arith.divf %32, %33 : vector<8x32xf32>
      %c0_25 = arith.constant 0 : index
      %c0_26 = arith.constant 0 : index
      %35 = vector.load %arg11[%c0_25, %c0_26] : memref<8x32xf32, #tpu.memory_space<vmem>>, vector<8x32xf32>
      %36 = vector.broadcast %31 : vector<8x1xf32> to vector<8x32xf32>
      %37 = arith.divf %35, %36 : vector<8x32xf32>
      %38 = arith.mulf %34, %34 : vector<8x32xf32>
      %39 = arith.subf %37, %38 : vector<8x32xf32>
      %cst_27 = arith.constant 0.000000e+00 : f32
      %40 = vector.broadcast %cst_27 : f32 to vector<8x32xf32>
      %41 = arith.maximumf %39, %40 : vector<8x32xf32>
      %42 = math.sqrt %41 : vector<8x32xf32>
      %c0_28 = arith.constant 0 : index
      %c0_29 = arith.constant 0 : index
      %43 = vector.load %arg3[%c0_28, %c0_29] : memref<32x64xf32, #tpu.memory_space<vmem>>, vector<32x64xf32>
      %c0_30 = arith.constant 0 : index
      %c0_31 = arith.constant 0 : index
      %44 = vector.load %arg4[%c0_30, %c0_31] : memref<1x64xf32, #tpu.memory_space<vmem>>, vector<1x64xf32>
      %cst_32 = arith.constant dense<0.000000e+00> : vector<8x64xf32>
      %45 = tpu.matmul %42, %43, %cst_32 {dimension_numbers = #tpu.dot_dimension_numbers<[1], [0], [0], [1], [0, 0, 1, 1], [], []>} : vector<8x32xf32>, vector<32x64xf32>, vector<8x64xf32> -> vector<8x64xf32>
      %46 = vector.broadcast %44 : vector<1x64xf32> to vector<8x64xf32>
      %47 = arith.addf %45, %46 : vector<8x64xf32>
      %cst_33 = arith.constant 0.000000e+00 : f32
      %48 = vector.broadcast %cst_33 : f32 to vector<8x64xf32>
      %49 = arith.maximumf %47, %48 : vector<8x64xf32>
      %c0_34 = arith.constant 0 : index
      %c0_35 = arith.constant 0 : index
      %50 = vector.load %arg5[%c0_34, %c0_35] : memref<64x32xf32, #tpu.memory_space<vmem>>, vector<64x32xf32>
      %c0_36 = arith.constant 0 : index
      %c0_37 = arith.constant 0 : index
      %51 = vector.load %arg6[%c0_36, %c0_37] : memref<1x32xf32, #tpu.memory_space<vmem>>, vector<1x32xf32>
      %cst_38 = arith.constant dense<0.000000e+00> : vector<8x32xf32>
      %52 = tpu.matmul %49, %50, %cst_38 {dimension_numbers = #tpu.dot_dimension_numbers<[1], [0], [0], [1], [0, 0, 1, 1], [], []>} : vector<8x64xf32>, vector<64x32xf32>, vector<8x32xf32> -> vector<8x32xf32>
      %53 = vector.broadcast %51 : vector<1x32xf32> to vector<8x32xf32>
      %54 = arith.addf %52, %53 : vector<8x32xf32>
      %cst_39 = arith.constant 0.000000e+00 : f32
      %55 = vector.broadcast %cst_39 : f32 to vector<8x32xf32>
      %56 = arith.maximumf %54, %55 : vector<8x32xf32>
      %c0_40 = arith.constant 0 : index
      %c0_41 = arith.constant 0 : index
      %57 = vector.load %arg7[%c0_40, %c0_41] : memref<32x128xf32, #tpu.memory_space<vmem>>, vector<32x128xf32>
      %cst_42 = arith.constant dense<0.000000e+00> : vector<8x128xf32>
      %58 = tpu.matmul %56, %57, %cst_42 {dimension_numbers = #tpu.dot_dimension_numbers<[1], [0], [0], [1], [0, 0, 1, 1], [], []>} : vector<8x32xf32>, vector<32x128xf32>, vector<8x128xf32> -> vector<8x128xf32>
      %c0_43 = arith.constant 0 : index
      %c0_44 = arith.constant 0 : index
      %59 = vector.load %arg8[%c0_43, %c0_44] : memref<1x128xf32, #tpu.memory_space<vmem>>, vector<1x128xf32>
      %60 = vector.broadcast %59 : vector<1x128xf32> to vector<8x128xf32>
      %61 = arith.addf %58, %60 : vector<8x128xf32>
      %c0_45 = arith.constant 0 : index
      %c0_46 = arith.constant 0 : index
      %62 = vector.load %arg9[%c0_45, %c0_46] : memref<8x128xf32, #tpu.memory_space<vmem>>, vector<8x128xf32>
      tpu.vector_store %arg9[%c0_45, %c0_46], %61 {strides = array<i32>} : memref<8x128xf32, #tpu.memory_space<vmem>>, vector<8x128xf32>,
    } else {
    }
    return
  }
  func.func @transform_0(%arg0: i32, %arg1: i32) -> (i32, i32, i32) {
    %c0_i32 = arith.constant 0 : i32
    %c0_i32_0 = arith.constant 0 : i32
    return %arg0, %arg1, %c0_i32 : i32, i32, i32
  }
  func.func @transform_1(%arg0: i32, %arg1: i32) -> (i32, i32) {
    %c0_i32 = arith.constant 0 : i32
    %c0_i32_0 = arith.constant 0 : i32
    %c0_i32_1 = arith.constant 0 : i32
    return %c0_i32, %c0_i32_0 : i32, i32
  }
  func.func @transform_2(%arg0: i32, %arg1: i32) -> (i32, i32) {
    %c0_i32 = arith.constant 0 : i32
    %c0_i32_0 = arith.constant 0 : i32
    %c0_i32_1 = arith.constant 0 : i32
    return %c0_i32, %c0_i32_0 : i32, i32
  }
  func.func @transform_3(%arg0: i32, %arg1: i32) -> (i32, i32) {
    %c0_i32 = arith.constant 0 : i32
    %c0_i32_0 = arith.constant 0 : i32
    %c0_i32_1 = arith.constant 0 : i32
    return %c0_i32, %c0_i32_0 : i32, i32
  }
  func.func @transform_4(%arg0: i32, %arg1: i32) -> (i32, i32) {
    %c0_i32 = arith.constant 0 : i32
    %c0_i32_0 = arith.constant 0 : i32
    %c0_i32_1 = arith.constant 0 : i32
    return %c0_i32, %c0_i32_0 : i32, i32
  }
  func.func @transform_5(%arg0: i32, %arg1: i32) -> (i32, i32) {
    %c0_i32 = arith.constant 0 : i32
    %c0_i32_0 = arith.constant 0 : i32
    %c0_i32_1 = arith.constant 0 : i32
    return %c0_i32, %c0_i32_0 : i32, i32
  }
  func.func @transform_6(%arg0: i32, %arg1: i32) -> (i32, i32) {
    %c0_i32 = arith.constant 0 : i32
    %c0_i32_0 = arith.constant 0 : i32
    %c0_i32_1 = arith.constant 0 : i32
    return %c0_i32, %c0_i32_0 : i32, i32
  }
  func.func @transform_7(%arg0: i32, %arg1: i32) -> (i32, i32) {
    %c0_i32 = arith.constant 0 : i32
    %c0_i32_0 = arith.constant 0 : i32
    return %arg0, %c0_i32 : i32, i32
  }
}

</mosaic_0001>

<llo_original>
// kernel: tpu_custom_call.1
$region0: #{tpu_custom_call.1}
  #allocation0 [shape = 'u32[]', space=smem, size = 0x4, offset = 0x4, fixed_abs, tag = 'smem constant byte address 0x4 - core index']
  #allocation1 [shape = 'u32[144,128]{1,0:T(1,128)}', space=vmem, size = 0x12000, scoped, tag = 'internal scratch']
  #allocation2 [shape = 'f32[8,32]{1,0:T(8,128)}', space=vmem, size = 0x1000, scoped, tag = 'scratch operand']
  #allocation3 [shape = 'f32[8,32]{1,0:T(8,128)}', space=vmem, size = 0x1000, scoped, tag = 'scratch operand']
  #allocation4 [shape = 'f32[8,1]{1,0:T(8,128)}', space=vmem, size = 0x1000, scoped, tag = 'scratch operand']
  %s0 = inlined_call_operand.hbm [shape: f32[16,32,32], index: 0, kind: input, shape index: {}]
  %s1 = inlined_call_operand.vmem [shape: f32[32,64], index: 1, kind: input, shape index: {}]
  %s2 = inlined_call_operand.vmem [shape: f32[1,64], index: 2, kind: input, shape index: {}]
  %s3 = inlined_call_operand.vmem [shape: f32[64,32], index: 3, kind: input, shape index: {}]
  %s4 = inlined_call_operand.vmem [shape: f32[1,32], index: 4, kind: input, shape index: {}]
  %s5 = inlined_call_operand.vmem [shape: f32[32,128], index: 5, kind: input, shape index: {}]
  %s6 = inlined_call_operand.vmem [shape: f32[1,128], index: 6, kind: input, shape index: {}]
  %s7 = inlined_call_operand.hbm [shape: f32[16,128], index: 7, kind: output, shape index: {}]
  %s8 = sld [smem:[#allocation0]]
  $region73: #{tpu_custom_call.1} parent=0
    _
  %s10 = ssub.s32 1, %s8
  %s11 = scalar_select 0, %s10, %s8
  $region1: #{tpu_custom_call.1} parent=0
    #allocation5 [shape = 'u8[65536]{0}', space=vmem, size = 0x10000, scoped, tag = 'input window, operand 0']
    #allocation6 [shape = 's32[2]{0}', space=sflag, size = 0x8, scoped, tag = 'scoped memory for tpu_custom_call.1']
    #allocation7 [shape = 's32[2]{0}', space=sflag, size = 0x8, scoped, tag = 'scoped memory for tpu_custom_call.1']
    #allocation8 [shape = 'u8[8192]{0}', space=vmem, size = 0x2000, scoped, tag = 'output window, operand 0']
    %12 = vsyncpa [#allocation6], 0
    %s13 = scalar_lea.sflag [#allocation6], 1
    %14 = vsyncpa %s13, 0
    %15 = vsyncpa [#allocation7], 0
    %s16 = scalar_lea.sflag [#allocation7], 1
    %17 = vsyncpa %s16, 0
    loop: start=0, step=1, limit=10
    $region2: #{tpu_custom_call.1} parent=1 // loop_pre_header
      _
    $region3: #{tpu_custom_call.1} parent=1 // loop_header
      %s19 = sphi 0, %s23
      %p20 = scmp.ge.s32.totalorder %s19, 10
      %s26 = sphi 0, %s38
      %s27 = sphi 0, %s34
      %s28 = sphi 0, %s26
      %s29 = sphi 0, %s27
      %s30 = sphi 0, %s28
      %s31 = sphi 0, %s29
      %s43 = sphi 0, %s45
      %s46 = sphi 0, %s43
      %s47 = sphi 0, %s46
      %s63 = sphi 0, %s47
      %s67 = sphi 0, %s67
      %s69 = sphi 0, %s67
      %s70 = sphi 0, %s69
      %s84 = sphi 0, %s70
      %s88 = sphi 0, %s88
      %s90 = sphi 0, %s88
      %s91 = sphi 0, %s90
      %s105 = sphi 0, %s91
      %s109 = sphi 0, %s109
      %s111 = sphi 0, %s109
      %s112 = sphi 0, %s111
      %s126 = sphi 0, %s112
      %s130 = sphi 0, %s130
      %s132 = sphi 0, %s130
      %s133 = sphi 0, %s132
      %s147 = sphi 0, %s133
      %s151 = sphi 0, %s151
      %s153 = sphi 0, %s151
      %s154 = sphi 0, %s153
      %s168 = sphi 0, %s154
      %s172 = sphi 0, %s172
      %s174 = sphi 0, %s172
      %s175 = sphi 0, %s174
      %s189 = sphi 0, %s175
      %s195 = sphi 0, %s197
      %s198 = sphi 0, %s195
      %s199 = sphi 0, %s198
      %s215 = sphi 0, %s199
    $region4: #{tpu_custom_call.1} parent=1 // loop_header_branch
      %22 = sbr.rel (%p20) target = $region8
    $region5: #{tpu_custom_call.1} parent=1 // loop_body
      %s24 = ssub.s32 %s19, 1
      %s25 = ssub.s32 %s19, 2
      %s32 = sadd.s32 1, %s27
      %p33 = scmp.ge.s32.totalorder %s32, 4
      %s34 = scalar_select %p33, 0, %s32
      %s35 = sadd.s32 1, %s26
      %s36 = scalar_select %p33, %s35, %s26
      %p37 = scmp.ge.s32.totalorder %s36, 2
      %s38 = scalar_select %p37, 0, %s36
      %s39 = ssub.s32 %s26, %s38
      %s40 = ssub.s32 %s27, %s34
      %s41 = sor.u32 %s39, %s40
      %p42 = scmp.eq.s32.totalorder %s41, 0
      %s44 = sadd.s32 %s43, 1
      %s45 = scalar_select %p42, %s43, %s44
      %p48 = pneg %p42
      %p49 = scmp.eq.s32.totalorder %s19, 7
      %p50 = por %p48, %p49
      %p51 = scmp.ne.s32.totalorder %s43, %s46
      %p52 = scmp.eq.s32.totalorder %s19, 0
      %p53 = por %p51, %p52
      %p54 = scmp.ne.s32.totalorder %s43, %s46
      %p55 = scmp.eq.s32.totalorder %s24, 7
      %p56 = por %p54, %p55
      %p57 = scmp.ne.s32.totalorder %s46, %s47
      %p58 = scmp.eq.s32.totalorder %s24, 0
      %p59 = por %p57, %p58
      %p60 = scmp.ne.s32.totalorder %s46, %s47
      %p61 = scmp.eq.s32.totalorder %s25, 7
      %p62 = por %p60, %p61
      %p64 = scmp.ne.s32.totalorder %s47, %s63
      %p65 = scmp.eq.s32.totalorder %s25, 0
      %p66 = por %p64, %p65
      %s68 = sadd.s32 %s67, 1
      %p71 = scmp.eq.s32.totalorder %s19, 7
      %p72 = scmp.ne.s32.totalorder %s67, %s69
      %p73 = scmp.eq.s32.totalorder %s19, 0
      %p74 = por %p72, %p73
      %p75 = scmp.ne.s32.totalorder %s67, %s69
      %p76 = scmp.eq.s32.totalorder %s24, 7
      %p77 = por %p75, %p76
      %p78 = scmp.ne.s32.totalorder %s69, %s70
      %p79 = scmp.eq.s32.totalorder %s24, 0
      %p80 = por %p78, %p79
      %p81 = scmp.ne.s32.totalorder %s69, %s70
      %p82 = scmp.eq.s32.totalorder %s25, 7
      %p83 = por %p81, %p82
      %p85 = scmp.ne.s32.totalorder %s70, %s84
      %p86 = scmp.eq.s32.totalorder %s25, 0
      %p87 = por %p85, %p86
      %s89 = sadd.s32 %s88, 1
      %p92 = scmp.eq.s32.totalorder %s19, 7
      %p93 = scmp.ne.s32.totalorder %s88, %s90
      %p94 = scmp.eq.s32.totalorder %s19, 0
      %p95 = por %p93, %p94
      %p96 = scmp.ne.s32.totalorder %s88, %s90
      %p97 = scmp.eq.s32.totalorder %s24, 7
      %p98 = por %p96, %p97
      %p99 = scmp.ne.s32.totalorder %s90, %s91
      %p100 = scmp.eq.s32.totalorder %s24, 0
      %p101 = por %p99, %p100
      %p102 = scmp.ne.s32.totalorder %s90, %s91
      %p103 = scmp.eq.s32.totalorder %s25, 7
      %p104 = por %p102, %p103
      %p106 = scmp.ne.s32.totalorder %s91, %s105
      %p107 = scmp.eq.s32.totalorder %s25, 0
      %p108 = por %p106, %p107
      %s110 = sadd.s32 %s109, 1
      %p113 = scmp.eq.s32.totalorder %s19, 7
      %p114 = scmp.ne.s32.totalorder %s109, %s111
      %p115 = scmp.eq.s32.totalorder %s19, 0
      %p116 = por %p114, %p115
      %p117 = scmp.ne.s32.totalorder %s109, %s111
      %p118 = scmp.eq.s32.totalorder %s24, 7
      %p119 = por %p117, %p118
      %p120 = scmp.ne.s32.totalorder %s111, %s112
      %p121 = scmp.eq.s32.totalorder %s24, 0
      %p122 = por %p120, %p121
      %p123 = scmp.ne.s32.totalorder %s111, %s112
      %p124 = scmp.eq.s32.totalorder %s25, 7
      %p125 = por %p123, %p124
      %p127 = scmp.ne.s32.totalorder %s112, %s126
      %p128 = scmp.eq.s32.totalorder %s25, 0
      %p129 = por %p127, %p128
      %s131 = sadd.s32 %s130, 1
      %p134 = scmp.eq.s32.totalorder %s19, 7
      %p135 = scmp.ne.s32.totalorder %s130, %s132
      %p136 = scmp.eq.s32.totalorder %s19, 0
      %p137 = por %p135, %p136
      %p138 = scmp.ne.s32.totalorder %s130, %s132
      %p139 = scmp.eq.s32.totalorder %s24, 7
      %p140 = por %p138, %p139
      %p141 = scmp.ne.s32.totalorder %s132, %s133
      %p142 = scmp.eq.s32.totalorder %s24, 0
      %p143 = por %p141, %p142
      %p144 = scmp.ne.s32.totalorder %s132, %s133
      %p145 = scmp.eq.s32.totalorder %s25, 7
      %p146 = por %p144, %p145
      %p148 = scmp.ne.s32.totalorder %s133, %s147
      %p149 = scmp.eq.s32.totalorder %s25, 0
      %p150 = por %p148, %p149
      %s152 = sadd.s32 %s151, 1
      %p155 = scmp.eq.s32.totalorder %s19, 7
      %p156 = scmp.ne.s32.totalorder %s151, %s153
      %p157 = scmp.eq.s32.totalorder %s19, 0
      %p158 = por %p156, %p157
      %p159 = scmp.ne.s32.totalorder %s151, %s153
      %p160 = scmp.eq.s32.totalorder %s24, 7
      %p161 = por %p159, %p160
      %p162 = scmp.ne.s32.totalorder %s153, %s154
      %p163 = scmp.eq.s32.totalorder %s24, 0
      %p164 = por %p162, %p163
      %p165 = scmp.ne.s32.totalorder %s153, %s154
      %p166 = scmp.eq.s32.totalorder %s25, 7
      %p167 = por %p165, %p166
      %p169 = scmp.ne.s32.totalorder %s154, %s168
      %p170 = scmp.eq.s32.totalorder %s25, 0
      %p171 = por %p169, %p170
      %s173 = sadd.s32 %s172, 1
      %p176 = scmp.eq.s32.totalorder %s19, 7
      %p177 = scmp.ne.s32.totalorder %s172, %s174
      %p178 = scmp.eq.s32.totalorder %s19, 0
      %p179 = por %p177, %p178
      %p180 = scmp.ne.s32.totalorder %s172, %s174
      %p181 = scmp.eq.s32.totalorder %s24, 7
      %p182 = por %p180, %p181
      %p183 = scmp.ne.s32.totalorder %s174, %s175
      %p184 = scmp.eq.s32.totalorder %s24, 0
      %p185 = por %p183, %p184
      %p186 = scmp.ne.s32.totalorder %s174, %s175
      %p187 = scmp.eq.s32.totalorder %s25, 7
      %p188 = por %p186, %p187
      %p190 = scmp.ne.s32.totalorder %s175, %s189
      %p191 = scmp.eq.s32.totalorder %s25, 0
      %p192 = por %p190, %p191
      %s193 = ssub.s32 %s26, %s38
      %p194 = scmp.eq.s32.totalorder %s193, 0
      %s196 = sadd.s32 %s195, 1
      %s197 = scalar_select %p194, %s195, %s196
      %p200 = pneg %p194
      %p201 = scmp.eq.s32.totalorder %s19, 7
      %p202 = por %p200, %p201
      %p203 = scmp.ne.s32.totalorder %s195, %s198
      %p204 = scmp.eq.s32.totalorder %s19, 0
      %p205 = por %p203, %p204
      %p206 = scmp.ne.s32.totalorder %s195, %s198
      %p207 = scmp.eq.s32.totalorder %s24, 7
      %p208 = por %p206, %p207
      %p209 = scmp.ne.s32.totalorder %s198, %s199
      %p210 = scmp.eq.s32.totalorder %s24, 0
      %p211 = por %p209, %p210
      %p212 = scmp.ne.s32.totalorder %s198, %s199
      %p213 = scmp.eq.s32.totalorder %s25, 7
      %p214 = por %p212, %p213
      %p216 = scmp.ne.s32.totalorder %s199, %s215
      %p217 = scmp.eq.s32.totalorder %s25, 0
      %p218 = por %p216, %p217
      %p219 = scmp.le.s32.totalorder 1, %s19
      %p220 = scmp.lt.s32.totalorder %s19, 9
      %p221 = pnand %p219, %p220
      %p222 = pneg %p221
      // Predicated region
      $region9: #{tpu_custom_call.1} parent=5 // pred_check
        _
      $region10: #{tpu_custom_call.1} parent=5 // pred_check_branch
        %224 = sbr.rel (%p221) target = $region12
      $region11: #{tpu_custom_call.1} parent=5 // pred_region
        %s225 = ssub.s32 %s19, 1
        // Predicated region
        $region13: #{tpu_custom_call.1} parent=11 // pred_check
          %p226 = pneg %p80
        $region14: #{tpu_custom_call.1} parent=11 // pred_check_branch
          %228 = sbr.rel (%p226) target = $region16
        $region15: #{tpu_custom_call.1} parent=11 // pred_region
          _
        $region16: #{tpu_custom_call.1} parent=11 // pred_fallthru
          _
        // Predicated region
        $region17: #{tpu_custom_call.1} parent=11 // pred_check
          %p229 = pneg %p101
        $region18: #{tpu_custom_call.1} parent=11 // pred_check_branch
          %231 = sbr.rel (%p229) target = $region20
        $region19: #{tpu_custom_call.1} parent=11 // pred_region
          _
        $region20: #{tpu_custom_call.1} parent=11 // pred_fallthru
          _
        // Predicated region
        $region21: #{tpu_custom_call.1} parent=11 // pred_check
          %p232 = pneg %p122
        $region22: #{tpu_custom_call.1} parent=11 // pred_check_branch
          %234 = sbr.rel (%p232) target = $region24
        $region23: #{tpu_custom_call.1} parent=11 // pred_region
          _
        $region24: #{tpu_custom_call.1} parent=11 // pred_fallthru
          _
        // Predicated region
        $region25: #{tpu_custom_call.1} parent=11 // pred_check
          %p235 = pneg %p143
        $region26: #{tpu_custom_call.1} parent=11 // pred_check_branch
          %237 = sbr.rel (%p235) target = $region28
        $region27: #{tpu_custom_call.1} parent=11 // pred_region
          _
        $region28: #{tpu_custom_call.1} parent=11 // pred_fallthru
          _
        // Predicated region
        $region29: #{tpu_custom_call.1} parent=11 // pred_check
          %p238 = pneg %p164
        $region30: #{tpu_custom_call.1} parent=11 // pred_check_branch
          %240 = sbr.rel (%p238) target = $region32
        $region31: #{tpu_custom_call.1} parent=11 // pred_region
          _
        $region32: #{tpu_custom_call.1} parent=11 // pred_fallthru
          _
        // Predicated region
        $region33: #{tpu_custom_call.1} parent=11 // pred_check
          %p241 = pneg %p185
        $region34: #{tpu_custom_call.1} parent=11 // pred_check_branch
          %243 = sbr.rel (%p241) target = $region36
        $region35: #{tpu_custom_call.1} parent=11 // pred_region
          _
        $region36: #{tpu_custom_call.1} parent=11 // pred_fallthru
          _
      $region12: #{tpu_custom_call.1} parent=5 // pred_fallthru
        _
      %p244 = scmp.lt.s32.totalorder %s19, 8
      // Predicated region
      $region37: #{tpu_custom_call.1} parent=5 // pred_check
        %p245 = pneg %p244
      $region38: #{tpu_custom_call.1} parent=5 // pred_check_branch
        %247 = sbr.rel (%p245) target = $region40
      $region39: #{tpu_custom_call.1} parent=5 // pred_region
        // Predicated region
        $region41: #{tpu_custom_call.1} parent=39 // pred_check
          %p248 = pneg %p53
        $region42: #{tpu_custom_call.1} parent=39 // pred_check_branch
          %250 = sbr.rel (%p248) target = $region44
        $region43: #{tpu_custom_call.1} parent=39 // pred_region
          %s251 = sand.u32 %s43, 1
          %s252 = scalar_lea.sflag [#allocation6], %s251
          %s253 = sand.u32 %s43, 1
          %s254 = smul.addr %s253, 64
          %s255 = scalar_lea.vmem [#allocation5], %s254
          %s256 = smul.u32 8, %s26
          %s258 = ssub.s32 1024, 1024
          %259 = vsyncadd %s252, %s258
          %s260 = smul.addr %s256, 4
          %s261 = sadd.s32 %s27, %s260
          %s262 = smul.addr %s261, 128
          %s263 = scalar_lea.hbm %s0, %s262
          %s264 = sshll.u32 %s255, 4
          %s265 = int_to_ptr.vmem [resolvable:$true] %s264
          %270 = dma.hbm_to_vmem [thread:$0]  %s263, 1024, %s265, %s252, 512, 128, 8
        $region44: #{tpu_custom_call.1} parent=39 // pred_fallthru
          _
      $region40: #{tpu_custom_call.1} parent=5 // pred_fallthru
        _
      %p271 = scmp.le.s32.totalorder 1, %s19
      %p272 = scmp.lt.s32.totalorder %s19, 9
      %p273 = pnand %p271, %p272
      %p274 = pneg %p273
      // Predicated region
      $region45: #{tpu_custom_call.1} parent=5 // pred_check
        _
      $region46: #{tpu_custom_call.1} parent=5 // pred_check_branch
        %276 = sbr.rel (%p273) target = $region48
      $region47: #{tpu_custom_call.1} parent=5 // pred_region
        %s277 = ssub.s32 %s19, 1
        %s278 = sand.u32 %s46, 1
        %s279 = scalar_lea.sflag [#allocation6], %s278
        %s280 = sand.u32 %s46, 1
        %s281 = smul.addr %s280, 64
        %s282 = scalar_lea.vmem [#allocation5], %s281
        // Predicated region
        $region49: #{tpu_custom_call.1} parent=47 // pred_check
          %p283 = pneg %p59
        $region50: #{tpu_custom_call.1} parent=47 // pred_check_branch
          %285 = sbr.rel (%p283) target = $region52
        $region51: #{tpu_custom_call.1} parent=47 // pred_region
          %286 = dma.done %s279, 1024
        $region52: #{tpu_custom_call.1} parent=47 // pred_fallthru
          _
        %s287 = sand.u32 %s46, 1
        %s288 = scalar_lea.sflag [#allocation6], %s287
        %s289 = sand.u32 %s46, 1
        %s290 = smul.addr %s289, 64
        %s291 = scalar_lea.vmem [#allocation5], %s290
        %p292 = pneg %p59
        %p293 = pneg %p56
        %p294 = pneg %p80
        %p295 = pneg %p77
        %p296 = pneg %p101
        %p297 = pneg %p98
        %p298 = pneg %p122
        %p299 = pneg %p119
        %p300 = pneg %p143
        %p301 = pneg %p140
        %p302 = pneg %p164
        %p303 = pneg %p161
        %p304 = pneg %p185
        %p305 = pneg %p182
        %p306 = pneg %p211
        %p307 = pneg %p208
        %s308 = sand.u32 %s198, 1
        %s309 = scalar_lea.sflag [#allocation7], %s308
        %s310 = sand.u32 %s198, 1
        %s311 = smul.addr %s310, 8
        %s312 = scalar_lea.vmem [#allocation8], %s311
        %s313 = smul.u32 8, %s28
        %p314 = scmp.eq.s32.totalorder %s29, 0
        // Predicated region
        $region53: #{tpu_custom_call.1} parent=47 // pred_check
          %p315 = pneg %p314
        $region54: #{tpu_custom_call.1} parent=47 // pred_check_branch
          %317 = sbr.rel (%p315) target = $region56
        $region55: #{tpu_custom_call.1} parent=47 // pred_region
          %vm318 = vcmask 261120
          %319 = vst.msk [vmem:[#allocation2] sm:$0xff] %vm318, 0.0
          %320 = vst.msk [vmem:[#allocation3] sm:$0xff] %vm318, 0.0
          %vm321 = vcmask 7168
          %322 = vst.msk [vmem:[#allocation4] sm:$0xff] %vm321, 0.0
        $region56: #{tpu_custom_call.1} parent=47 // pred_fallthru
          _
        %v323 = vld [vmem:[%s282] sm:$0xff]
        %v324 = vld [vmem:[%s282 + $0x8] sm:$0xff]
        %v325 = vld [vmem:[%s282 + $0x10] sm:$0xff]
        %v326 = vld [vmem:[%s282 + $0x18] sm:$0xff]
        %v327 = vld [vmem:[%s282 + $0x20] sm:$0xff]
        %v328 = vld [vmem:[%s282 + $0x28] sm:$0xff]
        %v329 = vld [vmem:[%s282 + $0x30] sm:$0xff]
        %v330 = vld [vmem:[%s282 + $0x38] sm:$0xff]
        %vm331 = vcmask 261120
        %v332 = vsel %vm331, %v323, 0.0
        %333 = vadd.xlane.f32.xlu0 %v332
        %v334 = vpop.xlane.xlu0 %333
        %v335 = vsel %vm331, %v324, 0.0
        %336 = vadd.xlane.f32.xlu0 %v335
        %v337 = vpop.xlane.xlu0 %336
        %v338 = vsel %vm331, %v325, 0.0
        %339 = vadd.xlane.f32.xlu0 %v338
        %v340 = vpop.xlane.xlu0 %339
        %v341 = vsel %vm331, %v326, 0.0
        %342 = vadd.xlane.f32.xlu0 %v341
        %v343 = vpop.xlane.xlu0 %342
        %v344 = vsel %vm331, %v327, 0.0
        %345 = vadd.xlane.f32.xlu0 %v344
        %v346 = vpop.xlane.xlu0 %345
        %v347 = vsel %vm331, %v328, 0.0
        %348 = vadd.xlane.f32.xlu0 %v347
        %v349 = vpop.xlane.xlu0 %348
        %v350 = vsel %vm331, %v329, 0.0
        %351 = vadd.xlane.f32.xlu0 %v350
        %v352 = vpop.xlane.xlu0 %351
        %v353 = vsel %vm331, %v330, 0.0
        %354 = vadd.xlane.f32.xlu0 %v353
        %v355 = vpop.xlane.xlu0 %354
        %vm356 = vcmp.ne.f32.partialorder %v334, 0.0
        %vm357 = vcmp.ne.f32.partialorder %v337, 0.0
        %vm358 = vcmp.ne.f32.partialorder %v340, 0.0
        %vm359 = vcmp.ne.f32.partialorder %v343, 0.0
        %vm360 = vcmp.ne.f32.partialorder %v346, 0.0
        %vm361 = vcmp.ne.f32.partialorder %v349, 0.0
        %vm362 = vcmp.ne.f32.partialorder %v352, 0.0
        %vm363 = vcmp.ne.f32.partialorder %v355, 0.0
        %v364 = vsel %vm356, 1, 0
        %v365 = vsel %vm357, 1, 0
        %v366 = vsel %vm358, 1, 0
        %v367 = vsel %vm359, 1, 0
        %v368 = vsel %vm360, 1, 0
        %v369 = vsel %vm361, 1, 0
        %v370 = vsel %vm362, 1, 0
        %v371 = vsel %vm363, 1, 0
        %v372 = vcvt.s32.f32 %v364
        %v373 = vcvt.s32.f32 %v365
        %v374 = vcvt.s32.f32 %v366
        %v375 = vcvt.s32.f32 %v367
        %v376 = vcvt.s32.f32 %v368
        %v377 = vcvt.s32.f32 %v369
        %v378 = vcvt.s32.f32 %v370
        %v379 = vcvt.s32.f32 %v371
        %v380 = vld [vmem:[#allocation2] sm:$0xff]
        %v382 = vlaneseq
        %v383 = vand.u32 %v382, 127
        %v384 = vlaneseq
        %v385 = vshrl.u32 %v384, 7
        %v386 = vsub.s32 %v383, %v385
        %v387 = vrot.slane %v372, %v386
        %vm388 = vcmask 64512
        %v389 = vsel %vm388, %v387, 0
        %391 = vmatprep.subr.mxu0 0.0
        %392 = vmatpush1.msra.mxu0 %v323
        %393 = vmatprep.subr.mxu0 0.0
        %394 = vmatpush1.msra.mxu0 0.0
        %395 = vmatprep.subr.mxu0 0.0
        %396 = vmatpush1.msra.mxu0 0.0
        %397 = vmatprep.subr.mxu0 0.0
        %398 = vmatpush1.msra.mxu0 0.0
        %399 = vmatprep.subr.mxu0 0.0
        %400 = vmatpush1.msra.mxu0 0.0
        %401 = vmatprep.subr.mxu0 0.0
        %402 = vmatpush1.msra.mxu0 0.0
        %403 = vmatprep.subr.mxu0 0.0
        %404 = vmatpush1.msra.mxu0 0.0
        %405 = vmatprep.subr.mxu0 0.0
        %406 = vmatpush1.msra.mxu0 0.0
        %407 = vmatprep.subr.mxu0 0.0
        %408 = vmatpush1.msra.mxu0 0.0
        %409 = vmatprep.subr.mxu0 0.0
        %410 = vmatpush1.msra.mxu0 0.0
        %411 = vmatprep.subr.mxu0 0.0
        %412 = vmatpush1.msra.mxu0 0.0
        %413 = vmatprep.subr.mxu0 0.0
        %414 = vmatpush1.msra.mxu0 0.0
        %415 = vmatprep.subr.mxu0 0.0
        %416 = vmatpush1.msra.mxu0 0.0
        %417 = vmatprep.subr.mxu0 0.0
        %418 = vmatpush1.msra.mxu0 0.0
        %419 = vmatprep.subr.mxu0 0.0
        %420 = vmatpush1.msra.mxu0 0.0
        %421 = vmatprep.subr.mxu0 0.0
        %422 = vmatpush1.msra.mxu0 0.0
        %423 = vmatprep.subr.mxu0 0.0
        %424 = vmatpush1.msra.mxu0 0.0
        %425 = vmatprep.subr.mxu0 0.0
        %426 = vmatpush1.msra.mxu0 0.0
        %427 = vmatprep.subr.mxu0 0.0
        %428 = vmatpush1.msra.mxu0 0.0
        %429 = vmatprep.subr.mxu0 0.0
        %430 = vmatpush1.msra.mxu0 0.0
        %431 = vmatprep.subr.mxu0 0.0
        %432 = vmatpush1.msra.mxu0 0.0
        %433 = vmatprep.subr.mxu0 0.0
        %434 = vmatpush1.msra.mxu0 0.0
        %435 = vmatprep.subr.mxu0 0.0
        %436 = vmatpush1.msra.mxu0 0.0
        %437 = vmatprep.subr.mxu0 0.0
        %438 = vmatpush1.msra.mxu0 0.0
        %439 = vmatprep.subr.mxu0 0.0
        %440 = vmatpush1.msra.mxu0 0.0
        %441 = vmatprep.subr.mxu0 0.0
        %442 = vmatpush1.msra.mxu0 0.0
        %443 = vmatprep.subr.mxu0 0.0
        %444 = vmatpush1.msra.mxu0 0.0
        %445 = vmatprep.subr.mxu0 0.0
        %446 = vmatpush1.msra.mxu0 0.0
        %447 = vmatprep.subr.mxu0 0.0
        %448 = vmatpush1.msra.mxu0 0.0
        %449 = vmatprep.subr.mxu0 0.0
        %450 = vmatpush1.msra.mxu0 0.0
        %451 = vmatprep.subr.mxu0 0.0
        %452 = vmatpush1.msra.mxu0 0.0
        %453 = vmatprep.subr.mxu0 0.0
        %454 = vmatpush1.msra.mxu0 0.0
        %455 = vmatprep.mubr.f32.mxu0 0.0
        %456 = vmatmul.mubr.f32.gmra.mrb[0].mxu0 %v389
        %v457 = vpop.f32.mrb[0].mxu0
        %v458 = vadd.f32 0.0, %v457
        %v459 = vpop.f32.mrb[0].mxu0
        %460 = vdwg.mxu0
        %v462 = vlaneseq
        %v463 = vshrl.u32 %v462, 7
        %v464 = vsub.s32 %v383, %v463
        %v465 = vrot.slane %v373, %v464
        %v466 = vsel %vm388, %v465, 0
        %468 = vmatprep.subr.mxu0 0.0
        %469 = vmatpush1.msra.mxu0 %v324
        %470 = vmatprep.subr.mxu0 0.0
        %471 = vmatpush1.msra.mxu0 0.0
        %472 = vmatprep.subr.mxu0 0.0
        %473 = vmatpush1.msra.mxu0 0.0
        %474 = vmatprep.subr.mxu0 0.0
        %475 = vmatpush1.msra.mxu0 0.0
        %476 = vmatprep.subr.mxu0 0.0
        %477 = vmatpush1.msra.mxu0 0.0
        %478 = vmatprep.subr.mxu0 0.0
        %479 = vmatpush1.msra.mxu0 0.0
        %480 = vmatprep.subr.mxu0 0.0
        %481 = vmatpush1.msra.mxu0 0.0
        %482 = vmatprep.subr.mxu0 0.0
        %483 = vmatpush1.msra.mxu0 0.0
        %484 = vmatprep.subr.mxu0 0.0
        %485 = vmatpush1.msra.mxu0 0.0
        %486 = vmatprep.subr.mxu0 0.0
        %487 = vmatpush1.msra.mxu0 0.0
        %488 = vmatprep.subr.mxu0 0.0
        %489 = vmatpush1.msra.mxu0 0.0
        %490 = vmatprep.subr.mxu0 0.0
        %491 = vmatpush1.msra.mxu0 0.0
        %492 = vmatprep.subr.mxu0 0.0
        %493 = vmatpush1.msra.mxu0 0.0
        %494 = vmatprep.subr.mxu0 0.0
        %495 = vmatpush1.msra.mxu0 0.0
        %496 = vmatprep.subr.mxu0 0.0
        %497 = vmatpush1.msra.mxu0 0.0
        %498 = vmatprep.subr.mxu0 0.0
        %499 = vmatpush1.msra.mxu0 0.0
        %500 = vmatprep.subr.mxu0 0.0
        %501 = vmatpush1.msra.mxu0 0.0
        %502 = vmatprep.subr.mxu0 0.0
        %503 = vmatpush1.msra.mxu0 0.0
        %504 = vmatprep.subr.mxu0 0.0
        %505 = vmatpush1.msra.mxu0 0.0
        %506 = vmatprep.subr.mxu0 0.0
        %507 = vmatpush1.msra.mxu0 0.0
        %508 = vmatprep.subr.mxu0 0.0
        %509 = vmatpush1.msra.mxu0 0.0
        %510 = vmatprep.subr.mxu0 0.0
        %511 = vmatpush1.msra.mxu0 0.0
        %512 = vmatprep.subr.mxu0 0.0
        %513 = vmatpush1.msra.mxu0 0.0
        %514 = vmatprep.subr.mxu0 0.0
        %515 = vmatpush1.msra.mxu0 0.0
        %516 = vmatprep.subr.mxu0 0.0
        %517 = vmatpush1.msra.mxu0 0.0
        %518 = vmatprep.subr.mxu0 0.0
        %519 = vmatpush1.msra.mxu0 0.0
        %520 = vmatprep.subr.mxu0 0.0
        %521 = vmatpush1.msra.mxu0 0.0
        %522 = vmatprep.subr.mxu0 0.0
        %523 = vmatpush1.msra.mxu0 0.0
        %524 = vmatprep.subr.mxu0 0.0
        %525 = vmatpush1.msra.mxu0 0.0
        %526 = vmatprep.subr.mxu0 0.0
        %527 = vmatpush1.msra.mxu0 0.0
        %528 = vmatprep.subr.mxu0 0.0
        %529 = vmatpush1.msra.mxu0 0.0
        %530 = vmatprep.subr.mxu0 0.0
        %531 = vmatpush1.msra.mxu0 0.0
        %532 = vmatprep.mubr.f32.mxu0 0.0
        %533 = vmatmul.mubr.f32.gmra.mrb[0].mxu0 %v466
        %v534 = vpop.f32.mrb[0].mxu0
        %v535 = vadd.f32 0.0, %v534
        %v536 = vpop.f32.mrb[0].mxu0
        %537 = vdwg.mxu0
        %v539 = vlaneseq
        %v540 = vshrl.u32 %v539, 7
        %v541 = vsub.s32 %v383, %v540
        %v542 = vrot.slane %v374, %v541
        %v543 = vsel %vm388, %v542, 0
        %545 = vmatprep.subr.mxu0 0.0
        %546 = vmatpush1.msra.mxu0 %v325
        %547 = vmatprep.subr.mxu0 0.0
        %548 = vmatpush1.msra.mxu0 0.0
        %549 = vmatprep.subr.mxu0 0.0
        %550 = vmatpush1.msra.mxu0 0.0
        %551 = vmatprep.subr.mxu0 0.0
        %552 = vmatpush1.msra.mxu0 0.0
        %553 = vmatprep.subr.mxu0 0.0
        %554 = vmatpush1.msra.mxu0 0.0
        %555 = vmatprep.subr.mxu0 0.0
        %556 = vmatpush1.msra.mxu0 0.0
        %557 = vmatprep.subr.mxu0 0.0
        %558 = vmatpush1.msra.mxu0 0.0
        %559 = vmatprep.subr.mxu0 0.0
        %560 = vmatpush1.msra.mxu0 0.0
        %561 = vmatprep.subr.mxu0 0.0
        %562 = vmatpush1.msra.mxu0 0.0
        %563 = vmatprep.subr.mxu0 0.0
        %564 = vmatpush1.msra.mxu0 0.0
        %565 = vmatprep.subr.mxu0 0.0
        %566 = vmatpush1.msra.mxu0 0.0
        %567 = vmatprep.subr.mxu0 0.0
        %568 = vmatpush1.msra.mxu0 0.0
        %569 = vmatprep.subr.mxu0 0.0
        %570 = vmatpush1.msra.mxu0 0.0
        %571 = vmatprep.subr.mxu0 0.0
        %572 = vmatpush1.msra.mxu0 0.0
        %573 = vmatprep.subr.mxu0 0.0
        %574 = vmatpush1.msra.mxu0 0.0
        %575 = vmatprep.subr.mxu0 0.0
        %576 = vmatpush1.msra.mxu0 0.0
        %577 = vmatprep.subr.mxu0 0.0
        %578 = vmatpush1.msra.mxu0 0.0
        %579 = vmatprep.subr.mxu0 0.0
        %580 = vmatpush1.msra.mxu0 0.0
        %581 = vmatprep.subr.mxu0 0.0
        %582 = vmatpush1.msra.mxu0 0.0
        %583 = vmatprep.subr.mxu0 0.0
        %584 = vmatpush1.msra.mxu0 0.0
        %585 = vmatprep.subr.mxu0 0.0
        %586 = vmatpush1.msra.mxu0 0.0
        %587 = vmatprep.subr.mxu0 0.0
        %588 = vmatpush1.msra.mxu0 0.0
        %589 = vmatprep.subr.mxu0 0.0
        %590 = vmatpush1.msra.mxu0 0.0
        %591 = vmatprep.subr.mxu0 0.0
        %592 = vmatpush1.msra.mxu0 0.0
        %593 = vmatprep.subr.mxu0 0.0
        %594 = vmatpush1.msra.mxu0 0.0
        %595 = vmatprep.subr.mxu0 0.0
        %596 = vmatpush1.msra.mxu0 0.0
        %597 = vmatprep.subr.mxu0 0.0
        %598 = vmatpush1.msra.mxu0 0.0
        %599 = vmatprep.subr.mxu0 0.0
        %600 = vmatpush1.msra.mxu0 0.0
        %601 = vmatprep.subr.mxu0 0.0
        %602 = vmatpush1.msra.mxu0 0.0
        %603 = vmatprep.subr.mxu0 0.0
        %604 = vmatpush1.msra.mxu0 0.0
        %605 = vmatprep.subr.mxu0 0.0
        %606 = vmatpush1.msra.mxu0 0.0
        %607 = vmatprep.subr.mxu0 0.0
        %608 = vmatpush1.msra.mxu0 0.0
        %609 = vmatprep.mubr.f32.mxu0 0.0
        %610 = vmatmul.mubr.f32.gmra.mrb[0].mxu0 %v543
        %v611 = vpop.f32.mrb[0].mxu0
        %v612 = vadd.f32 0.0, %v611
        %v613 = vpop.f32.mrb[0].mxu0
        %614 = vdwg.mxu0
        %v616 = vlaneseq
        %v617 = vshrl.u32 %v616, 7
        %v618 = vsub.s32 %v383, %v617
        %v619 = vrot.slane %v375, %v618
        %v620 = vsel %vm388, %v619, 0
        %622 = vmatprep.subr.mxu0 0.0
        %623 = vmatpush1.msra.mxu0 %v326
        %624 = vmatprep.subr.mxu0 0.0
        %625 = vmatpush1.msra.mxu0 0.0
        %626 = vmatprep.subr.mxu0 0.0
        %627 = vmatpush1.msra.mxu0 0.0
        %628 = vmatprep.subr.mxu0 0.0
        %629 = vmatpush1.msra.mxu0 0.0
        %630 = vmatprep.subr.mxu0 0.0
        %631 = vmatpush1.msra.mxu0 0.0
        %632 = vmatprep.subr.mxu0 0.0
        %633 = vmatpush1.msra.mxu0 0.0
        %634 = vmatprep.subr.mxu0 0.0
        %635 = vmatpush1.msra.mxu0 0.0
        %636 = vmatprep.subr.mxu0 0.0
        %637 = vmatpush1.msra.mxu0 0.0
        %638 = vmatprep.subr.mxu0 0.0
        %639 = vmatpush1.msra.mxu0 0.0
        %640 = vmatprep.subr.mxu0 0.0
        %641 = vmatpush1.msra.mxu0 0.0
        %642 = vmatprep.subr.mxu0 0.0
        %643 = vmatpush1.msra.mxu0 0.0
        %644 = vmatprep.subr.mxu0 0.0
        %645 = vmatpush1.msra.mxu0 0.0
        %646 = vmatprep.subr.mxu0 0.0
        %647 = vmatpush1.msra.mxu0 0.0
        %648 = vmatprep.subr.mxu0 0.0
        %649 = vmatpush1.msra.mxu0 0.0
        %650 = vmatprep.subr.mxu0 0.0
        %651 = vmatpush1.msra.mxu0 0.0
        %652 = vmatprep.subr.mxu0 0.0
        %653 = vmatpush1.msra.mxu0 0.0
        %654 = vmatprep.subr.mxu0 0.0
        %655 = vmatpush1.msra.mxu0 0.0
        %656 = vmatprep.subr.mxu0 0.0
        %657 = vmatpush1.msra.mxu0 0.0
        %658 = vmatprep.subr.mxu0 0.0
        %659 = vmatpush1.msra.mxu0 0.0
        %660 = vmatprep.subr.mxu0 0.0
        %661 = vmatpush1.msra.mxu0 0.0
        %662 = vmatprep.subr.mxu0 0.0
        %663 = vmatpush1.msra.mxu0 0.0
        %664 = vmatprep.subr.mxu0 0.0
        %665 = vmatpush1.msra.mxu0 0.0
        %666 = vmatprep.subr.mxu0 0.0
        %667 = vmatpush1.msra.mxu0 0.0
        %668 = vmatprep.subr.mxu0 0.0
        %669 = vmatpush1.msra.mxu0 0.0
        %670 = vmatprep.subr.mxu0 0.0
        %671 = vmatpush1.msra.mxu0 0.0
        %672 = vmatprep.subr.mxu0 0.0
        %673 = vmatpush1.msra.mxu0 0.0
        %674 = vmatprep.subr.mxu0 0.0
        %675 = vmatpush1.msra.mxu0 0.0
        %676 = vmatprep.subr.mxu0 0.0
        %677 = vmatpush1.msra.mxu0 0.0
        %678 = vmatprep.subr.mxu0 0.0
        %679 = vmatpush1.msra.mxu0 0.0
        %680 = vmatprep.subr.mxu0 0.0
        %681 = vmatpush1.msra.mxu0 0.0
        %682 = vmatprep.subr.mxu0 0.0
        %683 = vmatpush1.msra.mxu0 0.0
        %684 = vmatprep.subr.mxu0 0.0
        %685 = vmatpush1.msra.mxu0 0.0
        %686 = vmatprep.mubr.f32.mxu0 0.0
        %687 = vmatmul.mubr.f32.gmra.mrb[0].mxu0 %v620
        %v688 = vpop.f32.mrb[0].mxu0
        %v689 = vadd.f32 0.0, %v688
        %v690 = vpop.f32.mrb[0].mxu0
        %691 = vdwg.mxu0
        %v693 = vlaneseq
        %v694 = vshrl.u32 %v693, 7
        %v695 = vsub.s32 %v383, %v694
        %v696 = vrot.slane %v376, %v695
        %v697 = vsel %vm388, %v696, 0
        %699 = vmatprep.subr.mxu0 0.0
        %700 = vmatpush1.msra.mxu0 %v327
        %701 = vmatprep.subr.mxu0 0.0
        %702 = vmatpush1.msra.mxu0 0.0
        %703 = vmatprep.subr.mxu0 0.0
        %704 = vmatpush1.msra.mxu0 0.0
        %705 = vmatprep.subr.mxu0 0.0
        %706 = vmatpush1.msra.mxu0 0.0
        %707 = vmatprep.subr.mxu0 0.0
        %708 = vmatpush1.msra.mxu0 0.0
        %709 = vmatprep.subr.mxu0 0.0
        %710 = vmatpush1.msra.mxu0 0.0
        %711 = vmatprep.subr.mxu0 0.0
        %712 = vmatpush1.msra.mxu0 0.0
        %713 = vmatprep.subr.mxu0 0.0
        %714 = vmatpush1.msra.mxu0 0.0
        %715 = vmatprep.subr.mxu0 0.0
        %716 = vmatpush1.msra.mxu0 0.0
        %717 = vmatprep.subr.mxu0 0.0
        %718 = vmatpush1.msra.mxu0 0.0
        %719 = vmatprep.subr.mxu0 0.0
        %720 = vmatpush1.msra.mxu0 0.0
        %721 = vmatprep.subr.mxu0 0.0
        %722 = vmatpush1.msra.mxu0 0.0
        %723 = vmatprep.subr.mxu0 0.0
        %724 = vmatpush1.msra.mxu0 0.0
        %725 = vmatprep.subr.mxu0 0.0
        %726 = vmatpush1.msra.mxu0 0.0
        %727 = vmatprep.subr.mxu0 0.0
        %728 = vmatpush1.msra.mxu0 0.0
        %729 = vmatprep.subr.mxu0 0.0
        %730 = vmatpush1.msra.mxu0 0.0
        %731 = vmatprep.subr.mxu0 0.0
        %732 = vmatpush1.msra.mxu0 0.0
        %733 = vmatprep.subr.mxu0 0.0
        %734 = vmatpush1.msra.mxu0 0.0
        %735 = vmatprep.subr.mxu0 0.0
        %736 = vmatpush1.msra.mxu0 0.0
        %737 = vmatprep.subr.mxu0 0.0
        %738 = vmatpush1.msra.mxu0 0.0
        %739 = vmatprep.subr.mxu0 0.0
        %740 = vmatpush1.msra.mxu0 0.0
        %741 = vmatprep.subr.mxu0 0.0
        %742 = vmatpush1.msra.mxu0 0.0
        %743 = vmatprep.subr.mxu0 0.0
        %744 = vmatpush1.msra.mxu0 0.0
        %745 = vmatprep.subr.mxu0 0.0
        %746 = vmatpush1.msra.mxu0 0.0
        %747 = vmatprep.subr.mxu0 0.0
        %748 = vmatpush1.msra.mxu0 0.0
        %749 = vmatprep.subr.mxu0 0.0
        %750 = vmatpush1.msra.mxu0 0.0
        %751 = vmatprep.subr.mxu0 0.0
        %752 = vmatpush1.msra.mxu0 0.0
        %753 = vmatprep.subr.mxu0 0.0
        %754 = vmatpush1.msra.mxu0 0.0
        %755 = vmatprep.subr.mxu0 0.0
        %756 = vmatpush1.msra.mxu0 0.0
        %757 = vmatprep.subr.mxu0 0.0
        %758 = vmatpush1.msra.mxu0 0.0
        %759 = vmatprep.subr.mxu0 0.0
        %760 = vmatpush1.msra.mxu0 0.0
        %761 = vmatprep.subr.mxu0 0.0
        %762 = vmatpush1.msra.mxu0 0.0
        %763 = vmatprep.mubr.f32.mxu0 0.0
        %764 = vmatmul.mubr.f32.gmra.mrb[0].mxu0 %v697
        %v765 = vpop.f32.mrb[0].mxu0
        %v766 = vadd.f32 0.0, %v765
        %v767 = vpop.f32.mrb[0].mxu0
        %768 = vdwg.mxu0
        %v770 = vlaneseq
        %v771 = vshrl.u32 %v770, 7
        %v772 = vsub.s32 %v383, %v771
        %v773 = vrot.slane %v377, %v772
        %v774 = vsel %vm388, %v773, 0
        %776 = vmatprep.subr.mxu0 0.0
        %777 = vmatpush1.msra.mxu0 %v328
        %778 = vmatprep.subr.mxu0 0.0
        %779 = vmatpush1.msra.mxu0 0.0
        %780 = vmatprep.subr.mxu0 0.0
        %781 = vmatpush1.msra.mxu0 0.0
        %782 = vmatprep.subr.mxu0 0.0
        %783 = vmatpush1.msra.mxu0 0.0
        %784 = vmatprep.subr.mxu0 0.0
        %785 = vmatpush1.msra.mxu0 0.0
        %786 = vmatprep.subr.mxu0 0.0
        %787 = vmatpush1.msra.mxu0 0.0
        %788 = vmatprep.subr.mxu0 0.0
        %789 = vmatpush1.msra.mxu0 0.0
        %790 = vmatprep.subr.mxu0 0.0
        %791 = vmatpush1.msra.mxu0 0.0
        %792 = vmatprep.subr.mxu0 0.0
        %793 = vmatpush1.msra.mxu0 0.0
        %794 = vmatprep.subr.mxu0 0.0
        %795 = vmatpush1.msra.mxu0 0.0
        %796 = vmatprep.subr.mxu0 0.0
        %797 = vmatpush1.msra.mxu0 0.0
        %798 = vmatprep.subr.mxu0 0.0
        %799 = vmatpush1.msra.mxu0 0.0
        %800 = vmatprep.subr.mxu0 0.0
        %801 = vmatpush1.msra.mxu0 0.0
        %802 = vmatprep.subr.mxu0 0.0
        %803 = vmatpush1.msra.mxu0 0.0
        %804 = vmatprep.subr.mxu0 0.0
        %805 = vmatpush1.msra.mxu0 0.0
        %806 = vmatprep.subr.mxu0 0.0
        %807 = vmatpush1.msra.mxu0 0.0
        %808 = vmatprep.subr.mxu0 0.0
        %809 = vmatpush1.msra.mxu0 0.0
        %810 = vmatprep.subr.mxu0 0.0
        %811 = vmatpush1.msra.mxu0 0.0
        %812 = vmatprep.subr.mxu0 0.0
        %813 = vmatpush1.msra.mxu0 0.0
        %814 = vmatprep.subr.mxu0 0.0
        %815 = vmatpush1.msra.mxu0 0.0
        %816 = vmatprep.subr.mxu0 0.0
        %817 = vmatpush1.msra.mxu0 0.0
        %818 = vmatprep.subr.mxu0 0.0
        %819 = vmatpush1.msra.mxu0 0.0
        %820 = vmatprep.subr.mxu0 0.0
        %821 = vmatpush1.msra.mxu0 0.0
        %822 = vmatprep.subr.mxu0 0.0
        %823 = vmatpush1.msra.mxu0 0.0
        %824 = vmatprep.subr.mxu0 0.0
        %825 = vmatpush1.msra.mxu0 0.0
        %826 = vmatprep.subr.mxu0 0.0
        %827 = vmatpush1.msra.mxu0 0.0
        %828 = vmatprep.subr.mxu0 0.0
        %829 = vmatpush1.msra.mxu0 0.0
        %830 = vmatprep.subr.mxu0 0.0
        %831 = vmatpush1.msra.mxu0 0.0
        %832 = vmatprep.subr.mxu0 0.0
        %833 = vmatpush1.msra.mxu0 0.0
        %834 = vmatprep.subr.mxu0 0.0
        %835 = vmatpush1.msra.mxu0 0.0
        %836 = vmatprep.subr.mxu0 0.0
        %837 = vmatpush1.msra.mxu0 0.0
        %838 = vmatprep.subr.mxu0 0.0
        %839 = vmatpush1.msra.mxu0 0.0
        %840 = vmatprep.mubr.f32.mxu0 0.0
        %841 = vmatmul.mubr.f32.gmra.mrb[0].mxu0 %v774
        %v842 = vpop.f32.mrb[0].mxu0
        %v843 = vadd.f32 0.0, %v842
        %v844 = vpop.f32.mrb[0].mxu0
        %845 = vdwg.mxu0
        %v847 = vlaneseq
        %v848 = vshrl.u32 %v847, 7
        %v849 = vsub.s32 %v383, %v848
        %v850 = vrot.slane %v378, %v849
        %v851 = vsel %vm388, %v850, 0
        %853 = vmatprep.subr.mxu0 0.0
        %854 = vmatpush1.msra.mxu0 %v329
        %855 = vmatprep.subr.mxu0 0.0
        %856 = vmatpush1.msra.mxu0 0.0
        %857 = vmatprep.subr.mxu0 0.0
        %858 = vmatpush1.msra.mxu0 0.0
        %859 = vmatprep.subr.mxu0 0.0
        %860 = vmatpush1.msra.mxu0 0.0
        %861 = vmatprep.subr.mxu0 0.0
        %862 = vmatpush1.msra.mxu0 0.0
        %863 = vmatprep.subr.mxu0 0.0
        %864 = vmatpush1.msra.mxu0 0.0
        %865 = vmatprep.subr.mxu0 0.0
        %866 = vmatpush1.msra.mxu0 0.0
        %867 = vmatprep.subr.mxu0 0.0
        %868 = vmatpush1.msra.mxu0 0.0
        %869 = vmatprep.subr.mxu0 0.0
        %870 = vmatpush1.msra.mxu0 0.0
        %871 = vmatprep.subr.mxu0 0.0
        %872 = vmatpush1.msra.mxu0 0.0
        %873 = vmatprep.subr.mxu0 0.0
        %874 = vmatpush1.msra.mxu0 0.0
        %875 = vmatprep.subr.mxu0 0.0
        %876 = vmatpush1.msra.mxu0 0.0
        %877 = vmatprep.subr.mxu0 0.0
        %878 = vmatpush1.msra.mxu0 0.0
        %879 = vmatprep.subr.mxu0 0.0
        %880 = vmatpush1.msra.mxu0 0.0
        %881 = vmatprep.subr.mxu0 0.0
        %882 = vmatpush1.msra.mxu0 0.0
        %883 = vmatprep.subr.mxu0 0.0
        %884 = vmatpush1.msra.mxu0 0.0
        %885 = vmatprep.subr.mxu0 0.0
        %886 = vmatpush1.msra.mxu0 0.0
        %887 = vmatprep.subr.mxu0 0.0
        %888 = vmatpush1.msra.mxu0 0.0
        %889 = vmatprep.subr.mxu0 0.0
        %890 = vmatpush1.msra.mxu0 0.0
        %891 = vmatprep.subr.mxu0 0.0
        %892 = vmatpush1.msra.mxu0 0.0
        %893 = vmatprep.subr.mxu0 0.0
        %894 = vmatpush1.msra.mxu0 0.0
        %895 = vmatprep.subr.mxu0 0.0
        %896 = vmatpush1.msra.mxu0 0.0
        %897 = vmatprep.subr.mxu0 0.0
        %898 = vmatpush1.msra.mxu0 0.0
        %899 = vmatprep.subr.mxu0 0.0
        %900 = vmatpush1.msra.mxu0 0.0
        %901 = vmatprep.subr.mxu0 0.0
        %902 = vmatpush1.msra.mxu0 0.0
        %903 = vmatprep.subr.mxu0 0.0
        %904 = vmatpush1.msra.mxu0 0.0
        %905 = vmatprep.subr.mxu0 0.0
        %906 = vmatpush1.msra.mxu0 0.0
        %907 = vmatprep.subr.mxu0 0.0
        %908 = vmatpush1.msra.mxu0 0.0
        %909 = vmatprep.subr.mxu0 0.0
        %910 = vmatpush1.msra.mxu0 0.0
        %911 = vmatprep.subr.mxu0 0.0
        %912 = vmatpush1.msra.mxu0 0.0
        %913 = vmatprep.subr.mxu0 0.0
        %914 = vmatpush1.msra.mxu0 0.0
        %915 = vmatprep.subr.mxu0 0.0
        %916 = vmatpush1.msra.mxu0 0.0
        %917 = vmatprep.mubr.f32.mxu0 0.0
        %918 = vmatmul.mubr.f32.gmra.mrb[0].mxu0 %v851
        %v919 = vpop.f32.mrb[0].mxu0
        %v920 = vadd.f32 0.0, %v919
        %v921 = vpop.f32.mrb[0].mxu0
        %922 = vdwg.mxu0
        %v924 = vlaneseq
        %v925 = vshrl.u32 %v924, 7
        %v926 = vsub.s32 %v383, %v925
        %v927 = vrot.slane %v379, %v926
        %v928 = vsel %vm388, %v927, 0
        %930 = vmatprep.subr.mxu0 0.0
        %931 = vmatpush1.msra.mxu0 %v330
        %932 = vmatprep.subr.mxu0 0.0
        %933 = vmatpush1.msra.mxu0 0.0
        %934 = vmatprep.subr.mxu0 0.0
        %935 = vmatpush1.msra.mxu0 0.0
        %936 = vmatprep.subr.mxu0 0.0
        %937 = vmatpush1.msra.mxu0 0.0
        %938 = vmatprep.subr.mxu0 0.0
        %939 = vmatpush1.msra.mxu0 0.0
        %940 = vmatprep.subr.mxu0 0.0
        %941 = vmatpush1.msra.mxu0 0.0
        %942 = vmatprep.subr.mxu0 0.0
        %943 = vmatpush1.msra.mxu0 0.0
        %944 = vmatprep.subr.mxu0 0.0
        %945 = vmatpush1.msra.mxu0 0.0
        %946 = vmatprep.subr.mxu0 0.0
        %947 = vmatpush1.msra.mxu0 0.0
        %948 = vmatprep.subr.mxu0 0.0
        %949 = vmatpush1.msra.mxu0 0.0
        %950 = vmatprep.subr.mxu0 0.0
        %951 = vmatpush1.msra.mxu0 0.0
        %952 = vmatprep.subr.mxu0 0.0
        %953 = vmatpush1.msra.mxu0 0.0
        %954 = vmatprep.subr.mxu0 0.0
        %955 = vmatpush1.msra.mxu0 0.0
        %956 = vmatprep.subr.mxu0 0.0
        %957 = vmatpush1.msra.mxu0 0.0
        %958 = vmatprep.subr.mxu0 0.0
        %959 = vmatpush1.msra.mxu0 0.0
        %960 = vmatprep.subr.mxu0 0.0
        %961 = vmatpush1.msra.mxu0 0.0
        %962 = vmatprep.subr.mxu0 0.0
        %963 = vmatpush1.msra.mxu0 0.0
        %964 = vmatprep.subr.mxu0 0.0
        %965 = vmatpush1.msra.mxu0 0.0
        %966 = vmatprep.subr.mxu0 0.0
        %967 = vmatpush1.msra.mxu0 0.0
        %968 = vmatprep.subr.mxu0 0.0
        %969 = vmatpush1.msra.mxu0 0.0
        %970 = vmatprep.subr.mxu0 0.0
        %971 = vmatpush1.msra.mxu0 0.0
        %972 = vmatprep.subr.mxu0 0.0
        %973 = vmatpush1.msra.mxu0 0.0
        %974 = vmatprep.subr.mxu0 0.0
        %975 = vmatpush1.msra.mxu0 0.0
        %976 = vmatprep.subr.mxu0 0.0
        %977 = vmatpush1.msra.mxu0 0.0
        %978 = vmatprep.subr.mxu0 0.0
        %979 = vmatpush1.msra.mxu0 0.0
        %980 = vmatprep.subr.mxu0 0.0
        %981 = vmatpush1.msra.mxu0 0.0
        %982 = vmatprep.subr.mxu0 0.0
        %983 = vmatpush1.msra.mxu0 0.0
        %984 = vmatprep.subr.mxu0 0.0
        %985 = vmatpush1.msra.mxu0 0.0
        %986 = vmatprep.subr.mxu0 0.0
        %987 = vmatpush1.msra.mxu0 0.0
        %988 = vmatprep.subr.mxu0 0.0
        %989 = vmatpush1.msra.mxu0 0.0
        %990 = vmatprep.subr.mxu0 0.0
        %991 = vmatpush1.msra.mxu0 0.0
        %992 = vmatprep.subr.mxu0 0.0
        %993 = vmatpush1.msra.mxu0 0.0
        %994 = vmatprep.mubr.f32.mxu0 0.0
        %995 = vmatmul.mubr.f32.gmra.mrb[0].mxu0 %v928
        %v996 = vpop.f32.mrb[0].mxu0
        %v997 = vadd.f32 0.0, %v996
        %v998 = vpop.f32.mrb[0].mxu0
        %999 = vdwg.mxu0
        %v1008 = vrot.slane %v535, 7
        %vm1009 = vcmask 1041409
        %v1010 = vsel %vm1009, %v1008, %v458
        %v1011 = vrot.slane %v612, 6
        %vm1012 = vcmask 1042434
        %v1013 = vsel %vm1012, %v1011, %v1010
        %v1014 = vrot.slane %v689, 5
        %vm1015 = vcmask 1043459
        %v1016 = vsel %vm1015, %v1014, %v1013
        %v1017 = vrot.slane %v766, 4
        %vm1018 = vcmask 1044484
        %v1019 = vsel %vm1018, %v1017, %v1016
        %v1020 = vrot.slane %v843, 3
        %vm1021 = vcmask 1045509
        %v1022 = vsel %vm1021, %v1020, %v1019
        %v1023 = vrot.slane %v920, 2
        %vm1024 = vcmask 1046534
        %v1025 = vsel %vm1024, %v1023, %v1022
        %v1026 = vrot.slane %v997, 1
        %vm1027 = vcmask 1047559
        %v1028 = vsel %vm1027, %v1026, %v1025
        %v1030 = vadd.f32 %v380, %v1028
        %1031 = vst.msk [vmem:[#allocation2] sm:$0xff] %vm331, %v1030
        %v1032 = vld [vmem:[#allocation3] sm:$0xff]
        %v1033 = vmul.f32 %v323, %v323
        %v1034 = vmul.f32 %v324, %v324
        %v1035 = vmul.f32 %v325, %v325
        %v1036 = vmul.f32 %v326, %v326
        %v1037 = vmul.f32 %v327, %v327
        %v1038 = vmul.f32 %v328, %v328
        %v1039 = vmul.f32 %v329, %v329
        %v1040 = vmul.f32 %v330, %v330
        %1041 = vmatprep.subr.mxu0 0.0
        %1042 = vmatpush1.msra.mxu0 %v1033
        %1043 = vmatprep.subr.mxu0 0.0
        %1044 = vmatpush1.msra.mxu0 0.0
        %1045 = vmatprep.subr.mxu0 0.0
        %1046 = vmatpush1.msra.mxu0 0.0
        %1047 = vmatprep.subr.mxu0 0.0
        %1048 = vmatpush1.msra.mxu0 0.0
        %1049 = vmatprep.subr.mxu0 0.0
        %1050 = vmatpush1.msra.mxu0 0.0
        %1051 = vmatprep.subr.mxu0 0.0
        %1052 = vmatpush1.msra.mxu0 0.0
        %1053 = vmatprep.subr.mxu0 0.0
        %1054 = vmatpush1.msra.mxu0 0.0
        %1055 = vmatprep.subr.mxu0 0.0
        %1056 = vmatpush1.msra.mxu0 0.0
        %1057 = vmatprep.subr.mxu0 0.0
        %1058 = vmatpush1.msra.mxu0 0.0
        %1059 = vmatprep.subr.mxu0 0.0
        %1060 = vmatpush1.msra.mxu0 0.0
        %1061 = vmatprep.subr.mxu0 0.0
        %1062 = vmatpush1.msra.mxu0 0.0
        %1063 = vmatprep.subr.mxu0 0.0
        %1064 = vmatpush1.msra.mxu0 0.0
        %1065 = vmatprep.subr.mxu0 0.0
        %1066 = vmatpush1.msra.mxu0 0.0
        %1067 = vmatprep.subr.mxu0 0.0
        %1068 = vmatpush1.msra.mxu0 0.0
        %1069 = vmatprep.subr.mxu0 0.0
        %1070 = vmatpush1.msra.mxu0 0.0
        %1071 = vmatprep.subr.mxu0 0.0
        %1072 = vmatpush1.msra.mxu0 0.0
        %1073 = vmatprep.subr.mxu0 0.0
        %1074 = vmatpush1.msra.mxu0 0.0
        %1075 = vmatprep.subr.mxu0 0.0
        %1076 = vmatpush1.msra.mxu0 0.0
        %1077 = vmatprep.subr.mxu0 0.0
        %1078 = vmatpush1.msra.mxu0 0.0
        %1079 = vmatprep.subr.mxu0 0.0
        %1080 = vmatpush1.msra.mxu0 0.0
        %1081 = vmatprep.subr.mxu0 0.0
        %1082 = vmatpush1.msra.mxu0 0.0
        %1083 = vmatprep.subr.mxu0 0.0
        %1084 = vmatpush1.msra.mxu0 0.0
        %1085 = vmatprep.subr.mxu0 0.0
        %1086 = vmatpush1.msra.mxu0 0.0
        %1087 = vmatprep.subr.mxu0 0.0
        %1088 = vmatpush1.msra.mxu0 0.0
        %1089 = vmatprep.subr.mxu0 0.0
        %1090 = vmatpush1.msra.mxu0 0.0
        %1091 = vmatprep.subr.mxu0 0.0
        %1092 = vmatpush1.msra.mxu0 0.0
        %1093 = vmatprep.subr.mxu0 0.0
        %1094 = vmatpush1.msra.mxu0 0.0
        %1095 = vmatprep.subr.mxu0 0.0
        %1096 = vmatpush1.msra.mxu0 0.0
        %1097 = vmatprep.subr.mxu0 0.0
        %1098 = vmatpush1.msra.mxu0 0.0
        %1099 = vmatprep.subr.mxu0 0.0
        %1100 = vmatpush1.msra.mxu0 0.0
        %1101 = vmatprep.subr.mxu0 0.0
        %1102 = vmatpush1.msra.mxu0 0.0
        %1103 = vmatprep.subr.mxu0 0.0
        %1104 = vmatpush1.msra.mxu0 0.0
        %1105 = vmatprep.mubr.f32.mxu0 0.0
        %1106 = vmatmul.mubr.f32.gmra.mrb[0].mxu0 %v389
        %v1107 = vpop.f32.mrb[0].mxu0
        %v1108 = vadd.f32 0.0, %v1107
        %v1109 = vpop.f32.mrb[0].mxu0
        %1110 = vdwg.mxu0
        %1111 = vmatprep.subr.mxu0 0.0
        %1112 = vmatpush1.msra.mxu0 %v1034
        %1113 = vmatprep.subr.mxu0 0.0
        %1114 = vmatpush1.msra.mxu0 0.0
        %1115 = vmatprep.subr.mxu0 0.0
        %1116 = vmatpush1.msra.mxu0 0.0
        %1117 = vmatprep.subr.mxu0 0.0
        %1118 = vmatpush1.msra.mxu0 0.0
        %1119 = vmatprep.subr.mxu0 0.0
        %1120 = vmatpush1.msra.mxu0 0.0
        %1121 = vmatprep.subr.mxu0 0.0
        %1122 = vmatpush1.msra.mxu0 0.0
        %1123 = vmatprep.subr.mxu0 0.0
        %1124 = vmatpush1.msra.mxu0 0.0
        %1125 = vmatprep.subr.mxu0 0.0
        %1126 = vmatpush1.msra.mxu0 0.0
        %1127 = vmatprep.subr.mxu0 0.0
        %1128 = vmatpush1.msra.mxu0 0.0
        %1129 = vmatprep.subr.mxu0 0.0
        %1130 = vmatpush1.msra.mxu0 0.0
        %1131 = vmatprep.subr.mxu0 0.0
        %1132 = vmatpush1.msra.mxu0 0.0
        %1133 = vmatprep.subr.mxu0 0.0
        %1134 = vmatpush1.msra.mxu0 0.0
        %1135 = vmatprep.subr.mxu0 0.0
        %1136 = vmatpush1.msra.mxu0 0.0
        %1137 = vmatprep.subr.mxu0 0.0
        %1138 = vmatpush1.msra.mxu0 0.0
        %1139 = vmatprep.subr.mxu0 0.0
        %1140 = vmatpush1.msra.mxu0 0.0
        %1141 = vmatprep.subr.mxu0 0.0
        %1142 = vmatpush1.msra.mxu0 0.0
        %1143 = vmatprep.subr.mxu0 0.0
        %1144 = vmatpush1.msra.mxu0 0.0
        %1145 = vmatprep.subr.mxu0 0.0
        %1146 = vmatpush1.msra.mxu0 0.0
        %1147 = vmatprep.subr.mxu0 0.0
        %1148 = vmatpush1.msra.mxu0 0.0
        %1149 = vmatprep.subr.mxu0 0.0
        %1150 = vmatpush1.msra.mxu0 0.0
        %1151 = vmatprep.subr.mxu0 0.0
        %1152 = vmatpush1.msra.mxu0 0.0
        %1153 = vmatprep.subr.mxu0 0.0
        %1154 = vmatpush1.msra.mxu0 0.0
        %1155 = vmatprep.subr.mxu0 0.0
        %1156 = vmatpush1.msra.mxu0 0.0
        %1157 = vmatprep.subr.mxu0 0.0
        %1158 = vmatpush1.msra.mxu0 0.0
        %1159 = vmatprep.subr.mxu0 0.0
        %1160 = vmatpush1.msra.mxu0 0.0
        %1161 = vmatprep.subr.mxu0 0.0
        %1162 = vmatpush1.msra.mxu0 0.0
        %1163 = vmatprep.subr.mxu0 0.0
        %1164 = vmatpush1.msra.mxu0 0.0
        %1165 = vmatprep.subr.mxu0 0.0
        %1166 = vmatpush1.msra.mxu0 0.0
        %1167 = vmatprep.subr.mxu0 0.0
        %1168 = vmatpush1.msra.mxu0 0.0
        %1169 = vmatprep.subr.mxu0 0.0
        %1170 = vmatpush1.msra.mxu0 0.0
        %1171 = vmatprep.subr.mxu0 0.0
        %1172 = vmatpush1.msra.mxu0 0.0
        %1173 = vmatprep.subr.mxu0 0.0
        %1174 = vmatpush1.msra.mxu0 0.0
        %1175 = vmatprep.mubr.f32.mxu0 0.0
        %1176 = vmatmul.mubr.f32.gmra.mrb[0].mxu0 %v466
        %v1177 = vpop.f32.mrb[0].mxu0
        %v1178 = vadd.f32 0.0, %v1177
        %v1179 = vpop.f32.mrb[0].mxu0
        %1180 = vdwg.mxu0
        %1181 = vmatprep.subr.mxu0 0.0
        %1182 = vmatpush1.msra.mxu0 %v1035
        %1183 = vmatprep.subr.mxu0 0.0
        %1184 = vmatpush1.msra.mxu0 0.0
        %1185 = vmatprep.subr.mxu0 0.0
        %1186 = vmatpush1.msra.mxu0 0.0
        %1187 = vmatprep.subr.mxu0 0.0
        %1188 = vmatpush1.msra.mxu0 0.0
        %1189 = vmatprep.subr.mxu0 0.0
        %1190 = vmatpush1.msra.mxu0 0.0
        %1191 = vmatprep.subr.mxu0 0.0
        %1192 = vmatpush1.msra.mxu0 0.0
        %1193 = vmatprep.subr.mxu0 0.0
        %1194 = vmatpush1.msra.mxu0 0.0
        %1195 = vmatprep.subr.mxu0 0.0
        %1196 = vmatpush1.msra.mxu0 0.0
        %1197 = vmatprep.subr.mxu0 0.0
        %1198 = vmatpush1.msra.mxu0 0.0
        %1199 = vmatprep.subr.mxu0 0.0
        %1200 = vmatpush1.msra.mxu0 0.0
        %1201 = vmatprep.subr.mxu0 0.0
        %1202 = vmatpush1.msra.mxu0 0.0
        %1203 = vmatprep.subr.mxu0 0.0
        %1204 = vmatpush1.msra.mxu0 0.0
        %1205 = vmatprep.subr.mxu0 0.0
        %1206 = vmatpush1.msra.mxu0 0.0
        %1207 = vmatprep.subr.mxu0 0.0
        %1208 = vmatpush1.msra.mxu0 0.0
        %1209 = vmatprep.subr.mxu0 0.0
        %1210 = vmatpush1.msra.mxu0 0.0
        %1211 = vmatprep.subr.mxu0 0.0
        %1212 = vmatpush1.msra.mxu0 0.0
        %1213 = vmatprep.subr.mxu0 0.0
        %1214 = vmatpush1.msra.mxu0 0.0
        %1215 = vmatprep.subr.mxu0 0.0
        %1216 = vmatpush1.msra.mxu0 0.0
        %1217 = vmatprep.subr.mxu0 0.0
        %1218 = vmatpush1.msra.mxu0 0.0
        %1219 = vmatprep.subr.mxu0 0.0
        %1220 = vmatpush1.msra.mxu0 0.0
        %1221 = vmatprep.subr.mxu0 0.0
        %1222 = vmatpush1.msra.mxu0 0.0
        %1223 = vmatprep.subr.mxu0 0.0
        %1224 = vmatpush1.msra.mxu0 0.0
        %1225 = vmatprep.subr.mxu0 0.0
        %1226 = vmatpush1.msra.mxu0 0.0
        %1227 = vmatprep.subr.mxu0 0.0
        %1228 = vmatpush1.msra.mxu0 0.0
        %1229 = vmatprep.subr.mxu0 0.0
        %1230 = vmatpush1.msra.mxu0 0.0
        %1231 = vmatprep.subr.mxu0 0.0
        %1232 = vmatpush1.msra.mxu0 0.0
        %1233 = vmatprep.subr.mxu0 0.0
        %1234 = vmatpush1.msra.mxu0 0.0
        %1235 = vmatprep.subr.mxu0 0.0
        %1236 = vmatpush1.msra.mxu0 0.0
        %1237 = vmatprep.subr.mxu0 0.0
        %1238 = vmatpush1.msra.mxu0 0.0
        %1239 = vmatprep.subr.mxu0 0.0
        %1240 = vmatpush1.msra.mxu0 0.0
        %1241 = vmatprep.subr.mxu0 0.0
        %1242 = vmatpush1.msra.mxu0 0.0
        %1243 = vmatprep.subr.mxu0 0.0
        %1244 = vmatpush1.msra.mxu0 0.0
        %1245 = vmatprep.mubr.f32.mxu0 0.0
        %1246 = vmatmul.mubr.f32.gmra.mrb[0].mxu0 %v543
        %v1247 = vpop.f32.mrb[0].mxu0
        %v1248 = vadd.f32 0.0, %v1247
        %v1249 = vpop.f32.mrb[0].mxu0
        %1250 = vdwg.mxu0
        %1251 = vmatprep.subr.mxu0 0.0
        %1252 = vmatpush1.msra.mxu0 %v1036
        %1253 = vmatprep.subr.mxu0 0.0
        %1254 = vmatpush1.msra.mxu0 0.0
        %1255 = vmatprep.subr.mxu0 0.0
        %1256 = vmatpush1.msra.mxu0 0.0
        %1257 = vmatprep.subr.mxu0 0.0
        %1258 = vmatpush1.msra.mxu0 0.0
        %1259 = vmatprep.subr.mxu0 0.0
        %1260 = vmatpush1.msra.mxu0 0.0
        %1261 = vmatprep.subr.mxu0 0.0
        %1262 = vmatpush1.msra.mxu0 0.0
        %1263 = vmatprep.subr.mxu0 0.0
        %1264 = vmatpush1.msra.mxu0 0.0
        %1265 = vmatprep.subr.mxu0 0.0
        %1266 = vmatpush1.msra.mxu0 0.0
        %1267 = vmatprep.subr.mxu0 0.0
        %1268 = vmatpush1.msra.mxu0 0.0
        %1269 = vmatprep.subr.mxu0 0.0
        %1270 = vmatpush1.msra.mxu0 0.0
        %1271 = vmatprep.subr.mxu0 0.0
        %1272 = vmatpush1.msra.mxu0 0.0
        %1273 = vmatprep.subr.mxu0 0.0
        %1274 = vmatpush1.msra.mxu0 0.0
        %1275 = vmatprep.subr.mxu0 0.0
        %1276 = vmatpush1.msra.mxu0 0.0
        %1277 = vmatprep.subr.mxu0 0.0
        %1278 = vmatpush1.msra.mxu0 0.0
        %1279 = vmatprep.subr.mxu0 0.0
        %1280 = vmatpush1.msra.mxu0 0.0
        %1281 = vmatprep.subr.mxu0 0.0
        %1282 = vmatpush1.msra.mxu0 0.0
        %1283 = vmatprep.subr.mxu0 0.0
        %1284 = vmatpush1.msra.mxu0 0.0
        %1285 = vmatprep.subr.mxu0 0.0
        %1286 = vmatpush1.msra.mxu0 0.0
        %1287 = vmatprep.subr.mxu0 0.0
        %1288 = vmatpush1.msra.mxu0 0.0
        %1289 = vmatprep.subr.mxu0 0.0
        %1290 = vmatpush1.msra.mxu0 0.0
        %1291 = vmatprep.subr.mxu0 0.0
        %1292 = vmatpush1.msra.mxu0 0.0
        %1293 = vmatprep.subr.mxu0 0.0
        %1294 = vmatpush1.msra.mxu0 0.0
        %1295 = vmatprep.subr.mxu0 0.0
        %1296 = vmatpush1.msra.mxu0 0.0
        %1297 = vmatprep.subr.mxu0 0.0
        %1298 = vmatpush1.msra.mxu0 0.0
        %1299 = vmatprep.subr.mxu0 0.0
        %1300 = vmatpush1.msra.mxu0 0.0
        %1301 = vmatprep.subr.mxu0 0.0
        %1302 = vmatpush1.msra.mxu0 0.0
        %1303 = vmatprep.subr.mxu0 0.0
        %1304 = vmatpush1.msra.mxu0 0.0
        %1305 = vmatprep.subr.mxu0 0.0
        %1306 = vmatpush1.msra.mxu0 0.0
        %1307 = vmatprep.subr.mxu0 0.0
        %1308 = vmatpush1.msra.mxu0 0.0
        %1309 = vmatprep.subr.mxu0 0.0
        %1310 = vmatpush1.msra.mxu0 0.0
        %1311 = vmatprep.subr.mxu0 0.0
        %1312 = vmatpush1.msra.mxu0 0.0
        %1313 = vmatprep.subr.mxu0 0.0
        %1314 = vmatpush1.msra.mxu0 0.0
        %1315 = vmatprep.mubr.f32.mxu0 0.0
        %1316 = vmatmul.mubr.f32.gmra.mrb[0].mxu0 %v620
        %v1317 = vpop.f32.mrb[0].mxu0
        %v1318 = vadd.f32 0.0, %v1317
        %v1319 = vpop.f32.mrb[0].mxu0
        %1320 = vdwg.mxu0
        %1321 = vmatprep.subr.mxu0 0.0
        %1322 = vmatpush1.msra.mxu0 %v1037
        %1323 = vmatprep.subr.mxu0 0.0
        %1324 = vmatpush1.msra.mxu0 0.0
        %1325 = vmatprep.subr.mxu0 0.0
        %1326 = vmatpush1.msra.mxu0 0.0
        %1327 = vmatprep.subr.mxu0 0.0
        %1328 = vmatpush1.msra.mxu0 0.0
        %1329 = vmatprep.subr.mxu0 0.0
        %1330 = vmatpush1.msra.mxu0 0.0
        %1331 = vmatprep.subr.mxu0 0.0
        %1332 = vmatpush1.msra.mxu0 0.0
        %1333 = vmatprep.subr.mxu0 0.0
        %1334 = vmatpush1.msra.mxu0 0.0
        %1335 = vmatprep.subr.mxu0 0.0
        %1336 = vmatpush1.msra.mxu0 0.0
        %1337 = vmatprep.subr.mxu0 0.0
        %1338 = vmatpush1.msra.mxu0 0.0
        %1339 = vmatprep.subr.mxu0 0.0
        %1340 = vmatpush1.msra.mxu0 0.0
        %1341 = vmatprep.subr.mxu0 0.0
        %1342 = vmatpush1.msra.mxu0 0.0
        %1343 = vmatprep.subr.mxu0 0.0
        %1344 = vmatpush1.msra.mxu0 0.0
        %1345 = vmatprep.subr.mxu0 0.0
        %1346 = vmatpush1.msra.mxu0 0.0
        %1347 = vmatprep.subr.mxu0 0.0
        %1348 = vmatpush1.msra.mxu0 0.0
        %1349 = vmatprep.subr.mxu0 0.0
        %1350 = vmatpush1.msra.mxu0 0.0
        %1351 = vmatprep.subr.mxu0 0.0
        %1352 = vmatpush1.msra.mxu0 0.0
        %1353 = vmatprep.subr.mxu0 0.0
        %1354 = vmatpush1.msra.mxu0 0.0
        %1355 = vmatprep.subr.mxu0 0.0
        %1356 = vmatpush1.msra.mxu0 0.0
        %1357 = vmatprep.subr.mxu0 0.0
        %1358 = vmatpush1.msra.mxu0 0.0
        %1359 = vmatprep.subr.mxu0 0.0
        %1360 = vmatpush1.msra.mxu0 0.0
        %1361 = vmatprep.subr.mxu0 0.0
        %1362 = vmatpush1.msra.mxu0 0.0
        %1363 = vmatprep.subr.mxu0 0.0
        %1364 = vmatpush1.msra.mxu0 0.0
        %1365 = vmatprep.subr.mxu0 0.0
        %1366 = vmatpush1.msra.mxu0 0.0
        %1367 = vmatprep.subr.mxu0 0.0
        %1368 = vmatpush1.msra.mxu0 0.0
        %1369 = vmatprep.subr.mxu0 0.0
        %1370 = vmatpush1.msra.mxu0 0.0
        %1371 = vmatprep.subr.mxu0 0.0
        %1372 = vmatpush1.msra.mxu0 0.0
        %1373 = vmatprep.subr.mxu0 0.0
        %1374 = vmatpush1.msra.mxu0 0.0
        %1375 = vmatprep.subr.mxu0 0.0
        %1376 = vmatpush1.msra.mxu0 0.0
        %1377 = vmatprep.subr.mxu0 0.0
        %1378 = vmatpush1.msra.mxu0 0.0
        %1379 = vmatprep.subr.mxu0 0.0
        %1380 = vmatpush1.msra.mxu0 0.0
        %1381 = vmatprep.subr.mxu0 0.0
        %1382 = vmatpush1.msra.mxu0 0.0
        %1383 = vmatprep.subr.mxu0 0.0
        %1384 = vmatpush1.msra.mxu0 0.0
        %1385 = vmatprep.mubr.f32.mxu0 0.0
        %1386 = vmatmul.mubr.f32.gmra.mrb[0].mxu0 %v697
        %v1387 = vpop.f32.mrb[0].mxu0
        %v1388 = vadd.f32 0.0, %v1387
        %v1389 = vpop.f32.mrb[0].mxu0
        %1390 = vdwg.mxu0
        %1391 = vmatprep.subr.mxu0 0.0
        %1392 = vmatpush1.msra.mxu0 %v1038
        %1393 = vmatprep.subr.mxu0 0.0
        %1394 = vmatpush1.msra.mxu0 0.0
        %1395 = vmatprep.subr.mxu0 0.0
        %1396 = vmatpush1.msra.mxu0 0.0
        %1397 = vmatprep.subr.mxu0 0.0
        %1398 = vmatpush1.msra.mxu0 0.0
        %1399 = vmatprep.subr.mxu0 0.0
        %1400 = vmatpush1.msra.mxu0 0.0
        %1401 = vmatprep.subr.mxu0 0.0
        %1402 = vmatpush1.msra.mxu0 0.0
        %1403 = vmatprep.subr.mxu0 0.0
        %1404 = vmatpush1.msra.mxu0 0.0
        %1405 = vmatprep.subr.mxu0 0.0
        %1406 = vmatpush1.msra.mxu0 0.0
        %1407 = vmatprep.subr.mxu0 0.0
        %1408 = vmatpush1.msra.mxu0 0.0
        %1409 = vmatprep.subr.mxu0 0.0
        %1410 = vmatpush1.msra.mxu0 0.0
        %1411 = vmatprep.subr.mxu0 0.0
        %1412 = vmatpush1.msra.mxu0 0.0
        %1413 = vmatprep.subr.mxu0 0.0
        %1414 = vmatpush1.msra.mxu0 0.0
        %1415 = vmatprep.subr.mxu0 0.0
        %1416 = vmatpush1.msra.mxu0 0.0
        %1417 = vmatprep.subr.mxu0 0.0
        %1418 = vmatpush1.msra.mxu0 0.0
        %1419 = vmatprep.subr.mxu0 0.0
        %1420 = vmatpush1.msra.mxu0 0.0
        %1421 = vmatprep.subr.mxu0 0.0
        %1422 = vmatpush1.msra.mxu0 0.0
        %1423 = vmatprep.subr.mxu0 0.0
        %1424 = vmatpush1.msra.mxu0 0.0
        %1425 = vmatprep.subr.mxu0 0.0
        %1426 = vmatpush1.msra.mxu0 0.0
        %1427 = vmatprep.subr.mxu0 0.0
        %1428 = vmatpush1.msra.mxu0 0.0
        %1429 = vmatprep.subr.mxu0 0.0
        %1430 = vmatpush1.msra.mxu0 0.0
        %1431 = vmatprep.subr.mxu0 0.0
        %1432 = vmatpush1.msra.mxu0 0.0
        %1433 = vmatprep.subr.mxu0 0.0
        %1434 = vmatpush1.msra.mxu0 0.0
        %1435 = vmatprep.subr.mxu0 0.0
        %1436 = vmatpush1.msra.mxu0 0.0
        %1437 = vmatprep.subr.mxu0 0.0
        %1438 = vmatpush1.msra.mxu0 0.0
        %1439 = vmatprep.subr.mxu0 0.0
        %1440 = vmatpush1.msra.mxu0 0.0
        %1441 = vmatprep.subr.mxu0 0.0
        %1442 = vmatpush1.msra.mxu0 0.0
        %1443 = vmatprep.subr.mxu0 0.0
        %1444 = vmatpush1.msra.mxu0 0.0
        %1445 = vmatprep.subr.mxu0 0.0
        %1446 = vmatpush1.msra.mxu0 0.0
        %1447 = vmatprep.subr.mxu0 0.0
        %1448 = vmatpush1.msra.mxu0 0.0
        %1449 = vmatprep.subr.mxu0 0.0
        %1450 = vmatpush1.msra.mxu0 0.0
        %1451 = vmatprep.subr.mxu0 0.0
        %1452 = vmatpush1.msra.mxu0 0.0
        %1453 = vmatprep.subr.mxu0 0.0
        %1454 = vmatpush1.msra.mxu0 0.0
        %1455 = vmatprep.mubr.f32.mxu0 0.0
        %1456 = vmatmul.mubr.f32.gmra.mrb[0].mxu0 %v774
        %v1457 = vpop.f32.mrb[0].mxu0
        %v1458 = vadd.f32 0.0, %v1457
        %v1459 = vpop.f32.mrb[0].mxu0
        %1460 = vdwg.mxu0
        %1461 = vmatprep.subr.mxu0 0.0
        %1462 = vmatpush1.msra.mxu0 %v1039
        %1463 = vmatprep.subr.mxu0 0.0
        %1464 = vmatpush1.msra.mxu0 0.0
        %1465 = vmatprep.subr.mxu0 0.0
        %1466 = vmatpush1.msra.mxu0 0.0
        %1467 = vmatprep.subr.mxu0 0.0
        %1468 = vmatpush1.msra.mxu0 0.0
        %1469 = vmatprep.subr.mxu0 0.0
        %1470 = vmatpush1.msra.mxu0 0.0
        %1471 = vmatprep.subr.mxu0 0.0
        %1472 = vmatpush1.msra.mxu0 0.0
        %1473 = vmatprep.subr.mxu0 0.0
        %1474 = vmatpush1.msra.mxu0 0.0
        %1475 = vmatprep.subr.mxu0 0.0
        %1476 = vmatpush1.msra.mxu0 0.0
        %1477 = vmatprep.subr.mxu0 0.0
        %1478 = vmatpush1.msra.mxu0 0.0
        %1479 = vmatprep.subr.mxu0 0.0
        %1480 = vmatpush1.msra.mxu0 0.0
        %1481 = vmatprep.subr.mxu0 0.0
        %1482 = vmatpush1.msra.mxu0 0.0
        %1483 = vmatprep.subr.mxu0 0.0
        %1484 = vmatpush1.msra.mxu0 0.0
        %1485 = vmatprep.subr.mxu0 0.0
        %1486 = vmatpush1.msra.mxu0 0.0
        %1487 = vmatprep.subr.mxu0 0.0
        %1488 = vmatpush1.msra.mxu0 0.0
        %1489 = vmatprep.subr.mxu0 0.0
        %1490 = vmatpush1.msra.mxu0 0.0
        %1491 = vmatprep.subr.mxu0 0.0
        %1492 = vmatpush1.msra.mxu0 0.0
        %1493 = vmatprep.subr.mxu0 0.0
        %1494 = vmatpush1.msra.mxu0 0.0
        %1495 = vmatprep.subr.mxu0 0.0
        %1496 = vmatpush1.msra.mxu0 0.0
        %1497 = vmatprep.subr.mxu0 0.0
        %1498 = vmatpush1.msra.mxu0 0.0
        %1499 = vmatprep.subr.mxu0 0.0
        %1500 = vmatpush1.msra.mxu0 0.0
        %1501 = vmatprep.subr.mxu0 0.0
        %1502 = vmatpush1.msra.mxu0 0.0
        %1503 = vmatprep.subr.mxu0 0.0
        %1504 = vmatpush1.msra.mxu0 0.0
        %1505 = vmatprep.subr.mxu0 0.0
        %1506 = vmatpush1.msra.mxu0 0.0
        %1507 = vmatprep.subr.mxu0 0.0
        %1508 = vmatpush1.msra.mxu0 0.0
        %1509 = vmatprep.subr.mxu0 0.0
        %1510 = vmatpush1.msra.mxu0 0.0
        %1511 = vmatprep.subr.mxu0 0.0
        %1512 = vmatpush1.msra.mxu0 0.0
        %1513 = vmatprep.subr.mxu0 0.0
        %1514 = vmatpush1.msra.mxu0 0.0
        %1515 = vmatprep.subr.mxu0 0.0
        %1516 = vmatpush1.msra.mxu0 0.0
        %1517 = vmatprep.subr.mxu0 0.0
        %1518 = vmatpush1.msra.mxu0 0.0
        %1519 = vmatprep.subr.mxu0 0.0
        %1520 = vmatpush1.msra.mxu0 0.0
        %1521 = vmatprep.subr.mxu0 0.0
        %1522 = vmatpush1.msra.mxu0 0.0
        %1523 = vmatprep.subr.mxu0 0.0
        %1524 = vmatpush1.msra.mxu0 0.0
        %1525 = vmatprep.mubr.f32.mxu0 0.0
        %1526 = vmatmul.mubr.f32.gmra.mrb[0].mxu0 %v851
        %v1527 = vpop.f32.mrb[0].mxu0
        %v1528 = vadd.f32 0.0, %v1527
        %v1529 = vpop.f32.mrb[0].mxu0
        %1530 = vdwg.mxu0
        %1531 = vmatprep.subr.mxu0 0.0
        %1532 = vmatpush1.msra.mxu0 %v1040
        %1533 = vmatprep.subr.mxu0 0.0
        %1534 = vmatpush1.msra.mxu0 0.0
        %1535 = vmatprep.subr.mxu0 0.0
        %1536 = vmatpush1.msra.mxu0 0.0
        %1537 = vmatprep.subr.mxu0 0.0
        %1538 = vmatpush1.msra.mxu0 0.0
        %1539 = vmatprep.subr.mxu0 0.0
        %1540 = vmatpush1.msra.mxu0 0.0
        %1541 = vmatprep.subr.mxu0 0.0
        %1542 = vmatpush1.msra.mxu0 0.0
        %1543 = vmatprep.subr.mxu0 0.0
        %1544 = vmatpush1.msra.mxu0 0.0
        %1545 = vmatprep.subr.mxu0 0.0
        %1546 = vmatpush1.msra.mxu0 0.0
        %1547 = vmatprep.subr.mxu0 0.0
        %1548 = vmatpush1.msra.mxu0 0.0
        %1549 = vmatprep.subr.mxu0 0.0
        %1550 = vmatpush1.msra.mxu0 0.0
        %1551 = vmatprep.subr.mxu0 0.0
        %1552 = vmatpush1.msra.mxu0 0.0
        %1553 = vmatprep.subr.mxu0 0.0
        %1554 = vmatpush1.msra.mxu0 0.0
        %1555 = vmatprep.subr.mxu0 0.0
        %1556 = vmatpush1.msra.mxu0 0.0
        %1557 = vmatprep.subr.mxu0 0.0
        %1558 = vmatpush1.msra.mxu0 0.0
        %1559 = vmatprep.subr.mxu0 0.0
        %1560 = vmatpush1.msra.mxu0 0.0
        %1561 = vmatprep.subr.mxu0 0.0
        %1562 = vmatpush1.msra.mxu0 0.0
        %1563 = vmatprep.subr.mxu0 0.0
        %1564 = vmatpush1.msra.mxu0 0.0
        %1565 = vmatprep.subr.mxu0 0.0
        %1566 = vmatpush1.msra.mxu0 0.0
        %1567 = vmatprep.subr.mxu0 0.0
        %1568 = vmatpush1.msra.mxu0 0.0
        %1569 = vmatprep.subr.mxu0 0.0
        %1570 = vmatpush1.msra.mxu0 0.0
        %1571 = vmatprep.subr.mxu0 0.0
        %1572 = vmatpush1.msra.mxu0 0.0
        %1573 = vmatprep.subr.mxu0 0.0
        %1574 = vmatpush1.msra.mxu0 0.0
        %1575 = vmatprep.subr.mxu0 0.0
        %1576 = vmatpush1.msra.mxu0 0.0
        %1577 = vmatprep.subr.mxu0 0.0
        %1578 = vmatpush1.msra.mxu0 0.0
        %1579 = vmatprep.subr.mxu0 0.0
        %1580 = vmatpush1.msra.mxu0 0.0
        %1581 = vmatprep.subr.mxu0 0.0
        %1582 = vmatpush1.msra.mxu0 0.0
        %1583 = vmatprep.subr.mxu0 0.0
        %1584 = vmatpush1.msra.mxu0 0.0
        %1585 = vmatprep.subr.mxu0 0.0
        %1586 = vmatpush1.msra.mxu0 0.0
        %1587 = vmatprep.subr.mxu0 0.0
        %1588 = vmatpush1.msra.mxu0 0.0
        %1589 = vmatprep.subr.mxu0 0.0
        %1590 = vmatpush1.msra.mxu0 0.0
        %1591 = vmatprep.subr.mxu0 0.0
        %1592 = vmatpush1.msra.mxu0 0.0
        %1593 = vmatprep.subr.mxu0 0.0
        %1594 = vmatpush1.msra.mxu0 0.0
        %1595 = vmatprep.mubr.f32.mxu0 0.0
        %1596 = vmatmul.mubr.f32.gmra.mrb[0].mxu0 %v928
        %v1597 = vpop.f32.mrb[0].mxu0
        %v1598 = vadd.f32 0.0, %v1597
        %v1599 = vpop.f32.mrb[0].mxu0
        %1600 = vdwg.mxu0
        %v1609 = vrot.slane %v1178, 7
        %v1610 = vsel %vm1009, %v1609, %v1108
        %v1611 = vrot.slane %v1248, 6
        %v1612 = vsel %vm1012, %v1611, %v1610
        %v1613 = vrot.slane %v1318, 5
        %v1614 = vsel %vm1015, %v1613, %v1612
        %v1615 = vrot.slane %v1388, 4
        %v1616 = vsel %vm1018, %v1615, %v1614
        %v1617 = vrot.slane %v1458, 3
        %v1618 = vsel %vm1021, %v1617, %v1616
        %v1619 = vrot.slane %v1528, 2
        %v1620 = vsel %vm1024, %v1619, %v1618
        %v1621 = vrot.slane %v1598, 1
        %v1622 = vsel %vm1027, %v1621, %v1620
        %v1624 = vadd.f32 %v1032, %v1622
        %1625 = vst.msk [vmem:[#allocation3] sm:$0xff] %vm331, %v1624
        %v1626 = vld [vmem:[#allocation4] sm:$0xff]
        %v1627 = vsel %vm1009, %v465, %v387
        %v1628 = vsel %vm1012, %v542, %v1627
        %v1629 = vsel %vm1015, %v619, %v1628
        %v1630 = vsel %vm1018, %v696, %v1629
        %v1631 = vsel %vm1021, %v773, %v1630
        %v1632 = vsel %vm1024, %v850, %v1631
        %v1633 = vsel %vm1027, %v927, %v1632
        %v1635 = vsel %vm388, %v1633, 0.0
        %1636 = vadd.xlane.f32.xlu0 %v1635
        %v1637 = vpop.xlane.xlu0 %1636
        %v1638 = vadd.f32 %v1626, %v1637
        %vm1639 = vcmask 7168
        %1640 = vst.msk [vmem:[#allocation4] sm:$0xff] %vm1639, %v1638
        %p1641 = scmp.eq.s32.totalorder %s29, 3
        // Predicated region
        $region57: #{tpu_custom_call.1} parent=47 // pred_check
          %p1642 = pneg %p1641
        $region58: #{tpu_custom_call.1} parent=47 // pred_check_branch
          %1644 = sbr.rel (%p1642) target = $region60
        $region59: #{tpu_custom_call.1} parent=47 // pred_region
          %v1645 = vld [vmem:[#allocation4] sm:$0xff]
          %v1646 = vmax.f32 %v1645, 1.0
          %v1647 = vld [vmem:[#allocation2] sm:$0xff]
          %1649 = vset.pattern.permute.xlu0 0
          %1650 = vperm.xlu0 %1649, %v1646
          %v1651 = vpop.permute.xlu0 %1650
          %v1653 = vrcp.pop %v1651
          %v1654 = vmul.f32 %v1647, %v1653
          %v1655 = vld [vmem:[#allocation3] sm:$0xff]
          %v1656 = vmul.f32 %v1655, %v1653
          %v1657 = vmul.f32 %v1654, %v1654
          %v1658 = vsub.f32 %v1656, %v1657
          %v1659 = vmax.f32 %v1658, 0.0
          %v1660 = vrsqrt.pop %v1659
          %v1661 = vmul.f32 %v1659, %v1660
          %vm1662 = vcmp.eq.f32.partialorder %v1659, inf
          %v1663 = vsel %vm1662, %v1659, %v1661
          %vm1664 = vcmp.eq.f32.partialorder %v1659, 0.0
          %v1665 = vand.u32 %v1659, 2147483648
          %v1666 = vsel %vm1664, %v1665, %v1663
          %v1667 = vld [vmem:[%s1] sm:$0xff]
          %v1668 = vld [vmem:[%s1 + $0x8] sm:$0xff]
          %v1669 = vld [vmem:[%s1 + $0x10] sm:$0xff]
          %v1670 = vld [vmem:[%s1 + $0x18] sm:$0xff]
          %v1671 = vld [vmem:[%s2] sm:$0x1]
          %v1673 = vlaneseq
          %v1674 = vshrl.u32 %v1673, 7
          %v1675 = vsub.s32 0, %v1674
          %v1676 = vrot.slane %v1671, %v1675
          %v1679 = vsel %vm331, %v1666, 0
          %1681 = vmatprep.subr.mxu0 0.0
          %1682 = vmatpush1.msra.mxu0 %v1667
          %1683 = vmatprep.subr.mxu0 0.0
          %1684 = vmatpush1.msra.mxu0 %v1668
          %1685 = vmatprep.subr.mxu0 0.0
          %1686 = vmatpush1.msra.mxu0 %v1669
          %1687 = vmatprep.subr.mxu0 0.0
          %1688 = vmatpush1.msra.mxu0 %v1670
          %1689 = vmatprep.subr.mxu0 0.0
          %1690 = vmatpush1.msra.mxu0 0.0
          %1691 = vmatprep.subr.mxu0 0.0
          %1692 = vmatpush1.msra.mxu0 0.0
          %1693 = vmatprep.subr.mxu0 0.0
          %1694 = vmatpush1.msra.mxu0 0.0
          %1695 = vmatprep.subr.mxu0 0.0
          %1696 = vmatpush1.msra.mxu0 0.0
          %1697 = vmatprep.subr.mxu0 0.0
          %1698 = vmatpush1.msra.mxu0 0.0
          %1699 = vmatprep.subr.mxu0 0.0
          %1700 = vmatpush1.msra.mxu0 0.0
          %1701 = vmatprep.subr.mxu0 0.0
          %1702 = vmatpush1.msra.mxu0 0.0
          %1703 = vmatprep.subr.mxu0 0.0
          %1704 = vmatpush1.msra.mxu0 0.0
          %1705 = vmatprep.subr.mxu0 0.0
          %1706 = vmatpush1.msra.mxu0 0.0
          %1707 = vmatprep.subr.mxu0 0.0
          %1708 = vmatpush1.msra.mxu0 0.0
          %1709 = vmatprep.subr.mxu0 0.0
          %1710 = vmatpush1.msra.mxu0 0.0
          %1711 = vmatprep.subr.mxu0 0.0
          %1712 = vmatpush1.msra.mxu0 0.0
          %1713 = vmatprep.subr.mxu0 0.0
          %1714 = vmatpush1.msra.mxu0 0.0
          %1715 = vmatprep.subr.mxu0 0.0
          %1716 = vmatpush1.msra.mxu0 0.0
          %1717 = vmatprep.subr.mxu0 0.0
          %1718 = vmatpush1.msra.mxu0 0.0
          %1719 = vmatprep.subr.mxu0 0.0
          %1720 = vmatpush1.msra.mxu0 0.0
          %1721 = vmatprep.subr.mxu0 0.0
          %1722 = vmatpush1.msra.mxu0 0.0
          %1723 = vmatprep.subr.mxu0 0.0
          %1724 = vmatpush1.msra.mxu0 0.0
          %1725 = vmatprep.subr.mxu0 0.0
          %1726 = vmatpush1.msra.mxu0 0.0
          %1727 = vmatprep.subr.mxu0 0.0
          %1728 = vmatpush1.msra.mxu0 0.0
          %1729 = vmatprep.subr.mxu0 0.0
          %1730 = vmatpush1.msra.mxu0 0.0
          %1731 = vmatprep.subr.mxu0 0.0
          %1732 = vmatpush1.msra.mxu0 0.0
          %1733 = vmatprep.subr.mxu0 0.0
          %1734 = vmatpush1.msra.mxu0 0.0
          %1735 = vmatprep.subr.mxu0 0.0
          %1736 = vmatpush1.msra.mxu0 0.0
          %1737 = vmatprep.subr.mxu0 0.0
          %1738 = vmatpush1.msra.mxu0 0.0
          %1739 = vmatprep.subr.mxu0 0.0
          %1740 = vmatpush1.msra.mxu0 0.0
          %1741 = vmatprep.subr.mxu0 0.0
          %1742 = vmatpush1.msra.mxu0 0.0
          %1743 = vmatprep.subr.mxu0 0.0
          %1744 = vmatpush1.msra.mxu0 0.0
          %1745 = vmatprep.mubr.f32.mxu0 0.0
          %1746 = vmatmul.mubr.f32.gmra.mrb[0].mxu0 %v1679
          %v1747 = vpop.f32.mrb[0].mxu0
          %v1748 = vadd.f32 %v1676, %v1747
          %v1749 = vpop.f32.mrb[0].mxu0
          %1750 = vdwg.mxu0
          %v1751 = vmax.f32 %v1748, 0.0
          %v1752 = vld [vmem:[%s3] sm:$0xff]
          %v1753 = vld [vmem:[%s3 + $0x8] sm:$0xff]
          %v1754 = vld [vmem:[%s3 + $0x10] sm:$0xff]
          %v1755 = vld [vmem:[%s3 + $0x18] sm:$0xff]
          %v1756 = vld [vmem:[%s3 + $0x20] sm:$0xff]
          %v1757 = vld [vmem:[%s3 + $0x28] sm:$0xff]
          %v1758 = vld [vmem:[%s3 + $0x30] sm:$0xff]
          %v1759 = vld [vmem:[%s3 + $0x38] sm:$0xff]
          %v1760 = vld [vmem:[%s4] sm:$0x1]
          %v1762 = vlaneseq
          %v1763 = vshrl.u32 %v1762, 7
          %v1764 = vsub.s32 0, %v1763
          %v1765 = vrot.slane %v1760, %v1764
          %vm1767 = vcmask 523264
          %v1769 = vsel %vm1767, %v1751, 0
          %1771 = vmatprep.subr.mxu0 0.0
          %1772 = vmatpush1.msra.mxu0 %v1752
          %1773 = vmatprep.subr.mxu0 0.0
          %1774 = vmatpush1.msra.mxu0 %v1753
          %1775 = vmatprep.subr.mxu0 0.0
          %1776 = vmatpush1.msra.mxu0 %v1754
          %1777 = vmatprep.subr.mxu0 0.0
          %1778 = vmatpush1.msra.mxu0 %v1755
          %1779 = vmatprep.subr.mxu0 0.0
          %1780 = vmatpush1.msra.mxu0 %v1756
          %1781 = vmatprep.subr.mxu0 0.0
          %1782 = vmatpush1.msra.mxu0 %v1757
          %1783 = vmatprep.subr.mxu0 0.0
          %1784 = vmatpush1.msra.mxu0 %v1758
          %1785 = vmatprep.subr.mxu0 0.0
          %1786 = vmatpush1.msra.mxu0 %v1759
          %1787 = vmatprep.subr.mxu0 0.0
          %1788 = vmatpush1.msra.mxu0 0.0
          %1789 = vmatprep.subr.mxu0 0.0
          %1790 = vmatpush1.msra.mxu0 0.0
          %1791 = vmatprep.subr.mxu0 0.0
          %1792 = vmatpush1.msra.mxu0 0.0
          %1793 = vmatprep.subr.mxu0 0.0
          %1794 = vmatpush1.msra.mxu0 0.0
          %1795 = vmatprep.subr.mxu0 0.0
          %1796 = vmatpush1.msra.mxu0 0.0
          %1797 = vmatprep.subr.mxu0 0.0
          %1798 = vmatpush1.msra.mxu0 0.0
          %1799 = vmatprep.subr.mxu0 0.0
          %1800 = vmatpush1.msra.mxu0 0.0
          %1801 = vmatprep.subr.mxu0 0.0
          %1802 = vmatpush1.msra.mxu0 0.0
          %1803 = vmatprep.subr.mxu0 0.0
          %1804 = vmatpush1.msra.mxu0 0.0
          %1805 = vmatprep.subr.mxu0 0.0
          %1806 = vmatpush1.msra.mxu0 0.0
          %1807 = vmatprep.subr.mxu0 0.0
          %1808 = vmatpush1.msra.mxu0 0.0
          %1809 = vmatprep.subr.mxu0 0.0
          %1810 = vmatpush1.msra.mxu0 0.0
          %1811 = vmatprep.subr.mxu0 0.0
          %1812 = vmatpush1.msra.mxu0 0.0
          %1813 = vmatprep.subr.mxu0 0.0
          %1814 = vmatpush1.msra.mxu0 0.0
          %1815 = vmatprep.subr.mxu0 0.0
          %1816 = vmatpush1.msra.mxu0 0.0
          %1817 = vmatprep.subr.mxu0 0.0
          %1818 = vmatpush1.msra.mxu0 0.0
          %1819 = vmatprep.subr.mxu0 0.0
          %1820 = vmatpush1.msra.mxu0 0.0
          %1821 = vmatprep.subr.mxu0 0.0
          %1822 = vmatpush1.msra.mxu0 0.0
          %1823 = vmatprep.subr.mxu0 0.0
          %1824 = vmatpush1.msra.mxu0 0.0
          %1825 = vmatprep.subr.mxu0 0.0
          %1826 = vmatpush1.msra.mxu0 0.0
          %1827 = vmatprep.subr.mxu0 0.0
          %1828 = vmatpush1.msra.mxu0 0.0
          %1829 = vmatprep.subr.mxu0 0.0
          %1830 = vmatpush1.msra.mxu0 0.0
          %1831 = vmatprep.subr.mxu0 0.0
          %1832 = vmatpush1.msra.mxu0 0.0
          %1833 = vmatprep.subr.mxu0 0.0
          %1834 = vmatpush1.msra.mxu0 0.0
          %1835 = vmatprep.mubr.f32.mxu0 0.0
          %1836 = vmatmul.mubr.f32.gmra.mrb[0].mxu0 %v1769
          %v1837 = vpop.f32.mrb[0].mxu0
          %v1838 = vadd.f32 %v1765, %v1837
          %v1839 = vpop.f32.mrb[0].mxu0
          %1840 = vdwg.mxu0
          %v1841 = vmax.f32 %v1838, 0.0
          %v1842 = vld [vmem:[%s5] sm:$0xff]
          %v1843 = vld [vmem:[%s5 + $0x8] sm:$0xff]
          %v1844 = vld [vmem:[%s5 + $0x10] sm:$0xff]
          %v1845 = vld [vmem:[%s5 + $0x18] sm:$0xff]
          %v1846 = vld [vmem:[%s6] sm:$0x1]
          %v1848 = vlaneseq
          %v1849 = vshrl.u32 %v1848, 7
          %v1850 = vsub.s32 0, %v1849
          %v1851 = vrot.slane %v1846, %v1850
          %v1854 = vsel %vm331, %v1841, 0
          %1856 = vmatprep.subr.mxu0 0.0
          %1857 = vmatpush1.msra.mxu0 %v1842
          %1858 = vmatprep.subr.mxu0 0.0
          %1859 = vmatpush1.msra.mxu0 %v1843
          %1860 = vmatprep.subr.mxu0 0.0
          %1861 = vmatpush1.msra.mxu0 %v1844
          %1862 = vmatprep.subr.mxu0 0.0
          %1863 = vmatpush1.msra.mxu0 %v1845
          %1864 = vmatprep.subr.mxu0 0.0
          %1865 = vmatpush1.msra.mxu0 0.0
          %1866 = vmatprep.subr.mxu0 0.0
          %1867 = vmatpush1.msra.mxu0 0.0
          %1868 = vmatprep.subr.mxu0 0.0
          %1869 = vmatpush1.msra.mxu0 0.0
          %1870 = vmatprep.subr.mxu0 0.0
          %1871 = vmatpush1.msra.mxu0 0.0
          %1872 = vmatprep.subr.mxu0 0.0
          %1873 = vmatpush1.msra.mxu0 0.0
          %1874 = vmatprep.subr.mxu0 0.0
          %1875 = vmatpush1.msra.mxu0 0.0
          %1876 = vmatprep.subr.mxu0 0.0
          %1877 = vmatpush1.msra.mxu0 0.0
          %1878 = vmatprep.subr.mxu0 0.0
          %1879 = vmatpush1.msra.mxu0 0.0
          %1880 = vmatprep.subr.mxu0 0.0
          %1881 = vmatpush1.msra.mxu0 0.0
          %1882 = vmatprep.subr.mxu0 0.0
          %1883 = vmatpush1.msra.mxu0 0.0
          %1884 = vmatprep.subr.mxu0 0.0
          %1885 = vmatpush1.msra.mxu0 0.0
          %1886 = vmatprep.subr.mxu0 0.0
          %1887 = vmatpush1.msra.mxu0 0.0
          %1888 = vmatprep.subr.mxu0 0.0
          %1889 = vmatpush1.msra.mxu0 0.0
          %1890 = vmatprep.subr.mxu0 0.0
          %1891 = vmatpush1.msra.mxu0 0.0
          %1892 = vmatprep.subr.mxu0 0.0
          %1893 = vmatpush1.msra.mxu0 0.0
          %1894 = vmatprep.subr.mxu0 0.0
          %1895 = vmatpush1.msra.mxu0 0.0
          %1896 = vmatprep.subr.mxu0 0.0
          %1897 = vmatpush1.msra.mxu0 0.0
          %1898 = vmatprep.subr.mxu0 0.0
          %1899 = vmatpush1.msra.mxu0 0.0
          %1900 = vmatprep.subr.mxu0 0.0
          %1901 = vmatpush1.msra.mxu0 0.0
          %1902 = vmatprep.subr.mxu0 0.0
          %1903 = vmatpush1.msra.mxu0 0.0
          %1904 = vmatprep.subr.mxu0 0.0
          %1905 = vmatpush1.msra.mxu0 0.0
          %1906 = vmatprep.subr.mxu0 0.0
          %1907 = vmatpush1.msra.mxu0 0.0
          %1908 = vmatprep.subr.mxu0 0.0
          %1909 = vmatpush1.msra.mxu0 0.0
          %1910 = vmatprep.subr.mxu0 0.0
          %1911 = vmatpush1.msra.mxu0 0.0
          %1912 = vmatprep.subr.mxu0 0.0
          %1913 = vmatpush1.msra.mxu0 0.0
          %1914 = vmatprep.subr.mxu0 0.0
          %1915 = vmatpush1.msra.mxu0 0.0
          %1916 = vmatprep.subr.mxu0 0.0
          %1917 = vmatpush1.msra.mxu0 0.0
          %1918 = vmatprep.subr.mxu0 0.0
          %1919 = vmatpush1.msra.mxu0 0.0
          %1920 = vmatprep.mubr.f32.mxu0 0.0
          %1921 = vmatmul.mubr.f32.gmra.mrb[0].mxu0 %v1854
          %v1922 = vpop.f32.mrb[0].mxu0
          %v1923 = vadd.f32 %v1851, %v1922
          %v1924 = vpop.f32.mrb[0].mxu0
          %1925 = vdwg.mxu0
          %1926 = vst [vmem:[%s312] sm:$0xff] %v1923
        $region60: #{tpu_custom_call.1} parent=47 // pred_fallthru
          _
        %s1927 = sand.u32 %s198, 1
        %s1928 = scalar_lea.sflag [#allocation7], %s1927
        %s1929 = sand.u32 %s198, 1
        %s1930 = smul.addr %s1929, 8
        %s1931 = scalar_lea.vmem [#allocation8], %s1930
        // Predicated region
        $region61: #{tpu_custom_call.1} parent=47 // pred_check
          %p1932 = pneg %p208
        $region62: #{tpu_custom_call.1} parent=47 // pred_check_branch
          %1934 = sbr.rel (%p1932) target = $region64
        $region63: #{tpu_custom_call.1} parent=47 // pred_region
          %s1936 = ssub.s32 128, 128
          %1937 = vsyncadd %s1928, %s1936
          %s1938 = smul.addr %s28, 128
          %s1939 = scalar_lea.hbm %s7, %s1938
          %s1941 = sshll.u32 %s1931, 4
          %s1942 = int_to_ptr.vmem [resolvable:$true] %s1941
          %1944 = dma.vmem_to_hbm [thread:$0]  %s1942, 128, %s1939, %s1928
        $region64: #{tpu_custom_call.1} parent=47 // pred_fallthru
          _
      $region48: #{tpu_custom_call.1} parent=5 // pred_fallthru
        _
      %p1945 = scmp.le.s32.totalorder 2, %s19
      // Predicated region
      $region65: #{tpu_custom_call.1} parent=5 // pred_check
        %p1946 = pneg %p1945
      $region66: #{tpu_custom_call.1} parent=5 // pred_check_branch
        %1948 = sbr.rel (%p1946) target = $region68
      $region67: #{tpu_custom_call.1} parent=5 // pred_region
        %s1949 = ssub.s32 %s19, 2
        // Predicated region
        $region69: #{tpu_custom_call.1} parent=67 // pred_check
          %p1950 = pneg %p214
        $region70: #{tpu_custom_call.1} parent=67 // pred_check_branch
          %1952 = sbr.rel (%p1950) target = $region72
        $region71: #{tpu_custom_call.1} parent=67 // pred_region
          %s1953 = sand.u32 %s199, 1
          %s1954 = scalar_lea.sflag [#allocation7], %s1953
          %s1955 = sand.u32 %s199, 1
          %s1956 = smul.addr %s1955, 8
          %s1957 = scalar_lea.vmem [#allocation8], %s1956
          %1958 = dma.done %s1954, 128
        $region72: #{tpu_custom_call.1} parent=67 // pred_fallthru
          _
      $region68: #{tpu_custom_call.1} parent=5 // pred_fallthru
        _
    $region6: #{tpu_custom_call.1} parent=1 // loop_footer
      %s23 = sadd.s32 1, %s19
    $region7: #{tpu_custom_call.1} parent=1 // loop_footer_branch
      %18 = sbr.rel target = $region3
    $region8: #{tpu_custom_call.1} parent=1 // loop_exit
      _
    %1959 = vsyncpa [#allocation6], 1
    %s1960 = scalar_lea.sflag [#allocation6], 1
    %1961 = vsyncpa %s1960, 1
    %1962 = vsyncpa [#allocation7], 1
    %s1963 = scalar_lea.sflag [#allocation7], 1
    %1964 = vsyncpa %s1963, 1

</llo_original>
